<compile_context>
chip_gen: v5e
topology: v5e:2x2
jax: 0.10.0
libtpu: 0.0.40
codegen_flags: <defaults>
</compile_context>

<pallas_src>
import numpy as np
import jax
import jax.numpy as jnp
from jax.experimental import pallas as pl
from jax.experimental.pallas import tpu as pltpu

HIDDEN = 32
F_MID = 128           # GCNConv(hidden, 128) intermediate width
OUT_PAD = 128         # lane-dense padded logit width (real logits = 2)

ROW_TILE_MAX = 512    # node-row tile cap (multiple of 8)
COL_TILE_MAX = 512    # A_hat column / reduction tile cap (multiple of 128)
EDGE_TILE_MAX = 512   # edge tile cap for the head kernel


def _round_up(v, m):
    return ((v + m - 1) // m) * m


def _gcn_tiling(n):
    """Pick (row_tile, col_tile, n_pad) for the GCN kernels.

    - col tile is a multiple of 128 lanes (reduction axis of A_hat),
    - row tile is a multiple of 8 sublanes that divides n_pad,
    - keep >= 2 row tiles so the 'parallel' grid axis shards across v7x's
      two TensorCores (n_pad is always >= 128, so this is always possible).
    """
    tk = min(COL_TILE_MAX, _round_up(n, 128))
    n_pad = _round_up(n, tk)
    tm_cap = min(ROW_TILE_MAX, n_pad // 2)
    tm = max(8, (tm_cap // 8) * 8)
    while n_pad % tm != 0:
        tm -= 8
    return tm, tk, n_pad


def _edge_tiling(e):
    te = min(EDGE_TILE_MAX, _round_up(e, 8))
    e_pad = _round_up(e, te)
    return te, e_pad


def _vmem_limit(streamed_bytes, resident_bytes):
    """2x each streamed (pipelined) block + resident weights/scratch + headroom.

    Floored at the v6e/v7x scoped default (32 MiB, also safe on v5e's 128 MiB
    physical VMEM) and capped at 48 MiB to stay inside v7x's 64 MiB per-core.
    """
    need = 2 * streamed_bytes + resident_bytes + (4 << 20)
    return int(min(max(need, 32 << 20), 48 << 20))


# --------------------------- Pallas kernels ---------------------------------

def gcn1_kernel(a_ref, x_ref, w1_ref, b1_ref, w2_ref, hw1_ref, acc_ref):
    """GCN layer 1 (aggregate-then-project) fused with layer 2's projection.

    acc     = sum_k A_hat[i, k] @ X[k]          (bf16 MXU, f32 accumulate)
    hw1[i]  = relu(acc @ W1 + b1) @ W2          (f32 epilogue, stored bf16)
    """
    @pl.when(pl.program_id(1) == 0)
    def _():
        acc_ref[...] = jnp.zeros_like(acc_ref)

    acc_ref[...] += jnp.dot(a_ref[...], x_ref[...],
                            preferred_element_type=jnp.float32)

    @pl.when(pl.program_id(1) == pl.num_programs(1) - 1)
    def _():
        h1 = jnp.maximum(
            jnp.dot(acc_ref[...], w1_ref[...],
                    preferred_element_type=jnp.float32) + b1_ref[...], 0.0)
        hw1_ref[...] = jnp.dot(h1, w2_ref[...],
                               preferred_element_type=jnp.float32
                               ).astype(hw1_ref.dtype)


def gcn2_head_kernel(a_ref, hw1_ref, b2_ref, w3_ref, pq_ref, acc_ref):
    """GCN layer 2 aggregation + ReLU, fused with the merged edge-head proj.

    h2[i]      = relu(sum_k A_hat[i, k] @ HW1[k] + b2)
    PQ[i]      = h2[i] @ [W3[:H] | W3[H:]]     (one MXU push, one 64-lane store)
    """
    @pl.when(pl.program_id(1) == 0)
    def _():
        acc_ref[...] = jnp.zeros_like(acc_ref)

    acc_ref[...] += jnp.dot(a_ref[...], hw1_ref[...],
                            preferred_element_type=jnp.float32)

    @pl.when(pl.program_id(1) == pl.num_programs(1) - 1)
    def _():
        h2 = jnp.maximum(acc_ref[...] + b2_ref[...], 0.0)
        pq_ref[...] = jnp.dot(h2, w3_ref[...],
                              preferred_element_type=jnp.float32)


def edge_head_kernel(zp_ref, b3_ref, w4_ref, b4_ref, out_ref):
    """out = relu(P[src] + Q[dst] + b3) @ W4_pad + b4_pad  (lane-dense 128)."""
    h = jnp.maximum(zp_ref[...] + b3_ref[...], 0.0)
    out_ref[...] = jnp.dot(h, w4_ref[...],
                           preferred_element_type=jnp.float32) + b4_ref[...]


# ------------------------------ Glue (JAX) -----------------------------------

def gcn_normalize(edge_index, num_nodes):
    """Dense A_hat = D^{-1/2} (A + I) D^{-1/2}, PyG GCNConv convention."""
    src, dst = edge_index[0], edge_index[1]
    a = jnp.zeros((num_nodes, num_nodes), jnp.float32)
    a = a.at[dst, src].add(1.0)
    a = a + jnp.eye(num_nodes, dtype=jnp.float32)        # self loops
    deg = a.sum(axis=1)
    dinv = jnp.where(deg > 0, 1.0 / jnp.sqrt(deg), 0.0)
    return a * dinv[:, None] * dinv[None, :]


def init_params(key, hidden=HIDDEN):
    ks = jax.random.split(key, 6)

    def glorot(k, shape):
        lim = float(np.sqrt(6.0 / (shape[0] + shape[1])))
        return jax.random.uniform(k, shape, jnp.float32, -lim, lim)

    return dict(
        # GCNConv(hidden, 128)
        w1=glorot(ks[0], (hidden, F_MID)),
        b1=jnp.zeros((1, F_MID), jnp.float32),
        # GCNConv(128, hidden)
        w2=glorot(ks[1], (F_MID, hidden)),
        b2=jnp.zeros((1, hidden), jnp.float32),
        # Linear(2*hidden, hidden)
        w3=glorot(ks[2], (2 * hidden, hidden)),
        b3=jax.random.uniform(ks[3], (1, hidden), jnp.float32, -0.1, 0.1),
        # Linear(hidden, 2)
        w4=glorot(ks[4], (hidden, 2)),
        b4=jax.random.uniform(ks[5], (1, 2), jnp.float32, -0.1, 0.1),
    )


def phv_forward(params, x, pos_edge_index, neg_edge_index):
    n, f_in = x.shape
    a_hat = gcn_normalize(pos_edge_index, n)

    tm, tk, n_pad = _gcn_tiling(n)

    # bf16 MXU operands (A_hat and the aggregated feature slabs); accumulation
    # stays f32 inside the kernels.
    a_pad = (jnp.zeros((n_pad, n_pad), jnp.float32)
             .at[:n, :n].set(a_hat).astype(jnp.bfloat16))
    x_pad = (jnp.zeros((n_pad, f_in), jnp.float32)
             .at[:n].set(x).astype(jnp.bfloat16))

    grid = (n_pad // tm, n_pad // tk)
    BF16, F32 = 2, 4

    # ---- Kernel 1: GCN layer 1 + fused W2 projection -> HW1 [N, H] bf16 ----
    gcn1_stream = BF16 * (tm * tk + tk * f_in + tm * HIDDEN)
    gcn1_resident = F32 * (f_in * F_MID + F_MID + F_MID * HIDDEN + tm * f_in)
    gcn1_cparams = pltpu.CompilerParams(
        dimension_semantics=("parallel", "arbitrary"),
        vmem_limit_bytes=_vmem_limit(gcn1_stream, gcn1_resident))

    hw1 = pl.pallas_call(
        gcn1_kernel,
        out_shape=jax.ShapeDtypeStruct((n_pad, HIDDEN), jnp.bfloat16),
        grid_spec=pltpu.PrefetchScalarGridSpec(
            num_scalar_prefetch=0,
            grid=grid,
            in_specs=[
                pl.BlockSpec((tm, tk), lambda i, k: (i, k)),        # A_hat tile
                pl.BlockSpec((tk, f_in), lambda i, k: (k, 0)),      # X col tile
                pl.BlockSpec((f_in, F_MID), lambda i, k: (0, 0)),   # W1 resident
                pl.BlockSpec((1, F_MID), lambda i, k: (0, 0)),      # b1
                pl.BlockSpec((F_MID, HIDDEN), lambda i, k: (0, 0)), # W2
            ],
            out_specs=pl.BlockSpec((tm, HIDDEN), lambda i, k: (i, 0)),
            scratch_shapes=[pltpu.VMEM((tm, f_in), jnp.float32)],
        ),
        compiler_params=gcn1_cparams,
    )(a_pad, x_pad, params["w1"], params["b1"], params["w2"])

    # ---- Kernel 2: GCN layer 2 + merged head projection -> PQ [N, 2H] f32 --
    w3 = params["w3"]
    w3cat = jnp.concatenate([w3[:HIDDEN, :], w3[HIDDEN:, :]], axis=1)  # (H, 2H)

    gcn2_stream = BF16 * (tm * tk + tk * HIDDEN) + F32 * (tm * 2 * HIDDEN)
    gcn2_resident = F32 * (HIDDEN + HIDDEN * 2 * HIDDEN + tm * HIDDEN)
    gcn2_cparams = pltpu.CompilerParams(
        dimension_semantics=("parallel", "arbitrary"),
        vmem_limit_bytes=_vmem_limit(gcn2_stream, gcn2_resident))

    pq = pl.pallas_call(
        gcn2_head_kernel,
        out_shape=jax.ShapeDtypeStruct((n_pad, 2 * HIDDEN), jnp.float32),
        grid_spec=pltpu.PrefetchScalarGridSpec(
            num_scalar_prefetch=0,
            grid=grid,
            in_specs=[
                pl.BlockSpec((tm, tk), lambda i, k: (i, k)),            # A_hat
                pl.BlockSpec((tk, HIDDEN), lambda i, k: (k, 0)),        # HW1
                pl.BlockSpec((1, HIDDEN), lambda i, k: (0, 0)),         # b2
                pl.BlockSpec((HIDDEN, 2 * HIDDEN), lambda i, k: (0, 0)),# W3 cat
            ],
            out_specs=pl.BlockSpec((tm, 2 * HIDDEN), lambda i, k: (i, 0)),
            scratch_shapes=[pltpu.VMEM((tm, HIDDEN), jnp.float32)],
        ),
        compiler_params=gcn2_cparams,
    )(a_pad, hw1, params["b2"], w3cat)

    # ---- Edge gather + add (E-scaled, tiny; no [E, 2H] concat) --------------
    edge_index = jnp.concatenate([pos_edge_index, neg_edge_index], axis=-1)
    src, dst = edge_index[0], edge_index[1]
    e = src.shape[0]
    zp = pq[src, :HIDDEN] + pq[dst, HIDDEN:]              # [E, HIDDEN] f32

    te, e_pad = _edge_tiling(e)
    zp_pad = jnp.zeros((e_pad, HIDDEN), jnp.float32).at[:e].set(zp)

    # Lane-dense padded final linear (real logits in columns 0:2).
    w4_pad = jnp.zeros((HIDDEN, OUT_PAD), jnp.float32).at[:, :2].set(params["w4"])
    b4_pad = jnp.zeros((1, OUT_PAD), jnp.float32).at[:, :2].set(params["b4"])

    head_stream = F32 * (te * HIDDEN + te * OUT_PAD)
    head_resident = F32 * (HIDDEN + HIDDEN * OUT_PAD + OUT_PAD)
    head_cparams = pltpu.CompilerParams(
        dimension_semantics=("parallel",),
        vmem_limit_bytes=_vmem_limit(head_stream, head_resident))

    out_pad = pl.pallas_call(
        edge_head_kernel,
        out_shape=jax.ShapeDtypeStruct((e_pad, OUT_PAD), jnp.float32),
        grid_spec=pltpu.PrefetchScalarGridSpec(
            num_scalar_prefetch=0,
            grid=(e_pad // te,),
            in_specs=[
                pl.BlockSpec((te, HIDDEN), lambda i: (i, 0)),
                pl.BlockSpec((1, HIDDEN), lambda i: (0, 0)),
                pl.BlockSpec((HIDDEN, OUT_PAD), lambda i: (0, 0)),
                pl.BlockSpec((1, OUT_PAD), lambda i: (0, 0)),
            ],
            out_specs=pl.BlockSpec((te, OUT_PAD), lambda i: (i, 0)),
        ),
        compiler_params=head_cparams,
    )(zp_pad, params["b3"], w4_pad, b4_pad)

    return out_pad[:e, :2]


def phv_forward_ref(params, x, pos_edge_index, neg_edge_index,
                    mxu_dtype=jnp.float32):
    """Pure-JAX reference (mirrors the PyTorch forward).

    With mxu_dtype=bf16 it applies the same operand casts as the kernels
    (A_hat, X, HW1 in bf16; f32 accumulation) for a tight correctness check.
    """
    n = x.shape[0]
    a = gcn_normalize(pos_edge_index, n).astype(mxu_dtype)
    agg1 = jnp.dot(a, x.astype(mxu_dtype), preferred_element_type=jnp.float32)
    h1 = jax.nn.relu(agg1 @ params["w1"] + params["b1"])
    hw1 = (h1 @ params["w2"]).astype(mxu_dtype)
    agg2 = jnp.dot(a, hw1, preferred_element_type=jnp.float32)
    h2 = jax.nn.relu(agg2 + params["b2"])
    edge_index = jnp.concatenate([pos_edge_index, neg_edge_index], axis=-1)
    z = jnp.concatenate([h2[edge_index[0]], h2[edge_index[1]]], axis=1)
    o = jax.nn.relu(z @ params["w3"] + params["b3"])
    return o @ params["w4"] + params["b4"]


# --------------------------------- main ---------------------------------------

if __name__ == "__main__":
    key = jax.random.PRNGKey(0)
    k_param, k_x = jax.random.split(key)

    num_nodes = 8
    params = init_params(k_param, HIDDEN)
    x = jax.random.normal(k_x, (num_nodes, HIDDEN), jnp.float32)

    # Small deterministic graph: positive edges and negative (non-)edges.
    pos_edge_index = jnp.array(
        [[0, 1, 2, 3, 4, 5],
         [1, 2, 3, 4, 5, 6]], dtype=jnp.int32)          # [2, 6]
    neg_edge_index = jnp.array(
        [[0, 2, 4, 6, 7, 1],
         [5, 7, 0, 3, 2, 6]], dtype=jnp.int32)          # [2, 6]

    fwd = jax.jit(phv_forward)
    out = jax.block_until_ready(fwd(params, x, pos_edge_index, neg_edge_index))

    # Tight check vs a reference that applies the same bf16 operand casts.
    ref_bf16 = phv_forward_ref(params, x, pos_edge_index, neg_edge_index,
                               mxu_dtype=jnp.bfloat16)
    np.testing.assert_allclose(np.asarray(out), np.asarray(ref_bf16),
                               rtol=2e-3, atol=2e-3)
    # Loose check vs the pure-f32 PyTorch-style math (bf16 quantization error).
    ref_f32 = phv_forward_ref(params, x, pos_edge_index, neg_edge_index,
                              mxu_dtype=jnp.float32)
    np.testing.assert_allclose(np.asarray(out), np.asarray(ref_f32),
                               rtol=5e-2, atol=5e-2)

    assert out.shape == (12, 2)
    print("KERNEL_OK")
</pallas_src>

<mosaic_0001>
module attributes {stable_mosaic.version = 11 : i64} {
  func.func @gcn2_head_kernel(%arg0: i32, %arg1: i32, %arg2: memref<64x128xbf16, #tpu.memory_space<vmem>>, %arg3: memref<128x32xbf16, #tpu.memory_space<vmem>>, %arg4: memref<1x32xf32, #tpu.memory_space<vmem>>, %arg5: memref<32x64xf32, #tpu.memory_space<vmem>>, %arg6: memref<64x64xf32, #tpu.memory_space<vmem>>, %arg7: memref<64x32xf32, #tpu.memory_space<vmem>>) attributes {dimension_semantics = [#tpu.dimension_semantics<parallel>, #tpu.dimension_semantics<arbitrary>], iteration_bounds = array<i64: 2, 1>, scalar_prefetch = 0 : i64, scratch_operands = 1 : i64, tpu.core_type = #tpu.core_type<tc>, window_params = [{transform_indices = @transform_0, window_bounds = array<i64: 64, 128>}, {transform_indices = @transform_1, window_bounds = array<i64: 128, 32>}, {pipeline_mode = #tpu.pipeline_mode<synchronous>, transform_indices = @transform_2, window_bounds = array<i64: 1, 32>}, {pipeline_mode = #tpu.pipeline_mode<synchronous>, transform_indices = @transform_3, window_bounds = array<i64: 32, 64>}, {transform_indices = @transform_4, window_bounds = array<i64: 64, 64>}]} {
    %c0_i32 = arith.constant 0 : i32
    %0 = arith.cmpi eq, %arg1, %c0_i32 : i32
    %1 = arith.extui %0 : i1 to i32
    %c0_i32_0 = arith.constant 0 : i32
    %2 = arith.cmpi ne, %1, %c0_i32_0 : i32
    scf.if %2 {
      %cst_10 = arith.constant 0.000000e+00 : f32
      %12 = vector.broadcast %cst_10 : f32 to vector<64x32xf32>
      %c0_11 = arith.constant 0 : index
      %c0_12 = arith.constant 0 : index
      %13 = vector.load %arg7[%c0_11, %c0_12] : memref<64x32xf32, #tpu.memory_space<vmem>>, vector<64x32xf32>
      tpu.vector_store %arg7[%c0_11, %c0_12], %12 {strides = array<i32>} : memref<64x32xf32, #tpu.memory_space<vmem>>, vector<64x32xf32>,
    } else {
    }
    %c0 = arith.constant 0 : index
    %c0_1 = arith.constant 0 : index
    %3 = vector.load %arg7[%c0, %c0_1] : memref<64x32xf32, #tpu.memory_space<vmem>>, vector<64x32xf32>
    %c0_2 = arith.constant 0 : index
    %c0_3 = arith.constant 0 : index
    %4 = vector.load %arg2[%c0_2, %c0_3] : memref<64x128xbf16, #tpu.memory_space<vmem>>, vector<64x128xbf16>
    %c0_4 = arith.constant 0 : index
    %c0_5 = arith.constant 0 : index
    %5 = vector.load %arg3[%c0_4, %c0_5] : memref<128x32xbf16, #tpu.memory_space<vmem>>, vector<128x32xbf16>
    %cst = arith.constant dense<0.000000e+00> : vector<64x32xf32>
    %6 = tpu.matmul %4, %5, %cst {dimension_numbers = #tpu.dot_dimension_numbers<[1], [0], [0], [1], [0, 0, 1, 1], [], []>} : vector<64x128xbf16>, vector<128x32xbf16>, vector<64x32xf32> -> vector<64x32xf32>
    %7 = arith.addf %3, %6 : vector<64x32xf32>
    %c0_6 = arith.constant 0 : index
    %c0_7 = arith.constant 0 : index
    %8 = vector.load %arg7[%c0_6, %c0_7] : memref<64x32xf32, #tpu.memory_space<vmem>>, vector<64x32xf32>
    tpu.vector_store %arg7[%c0_6, %c0_7], %7 {strides = array<i32>} : memref<64x32xf32, #tpu.memory_space<vmem>>, vector<64x32xf32>,
    %c0_i32_8 = arith.constant 0 : i32
    %9 = arith.cmpi eq, %arg1, %c0_i32_8 : i32
    %10 = arith.extui %9 : i1 to i32
    %c0_i32_9 = arith.constant 0 : i32
    %11 = arith.cmpi ne, %10, %c0_i32_9 : i32
    scf.if %11 {
      %c0_10 = arith.constant 0 : index
      %c0_11 = arith.constant 0 : index
      %12 = vector.load %arg7[%c0_10, %c0_11] : memref<64x32xf32, #tpu.memory_space<vmem>>, vector<64x32xf32>
      %c0_12 = arith.constant 0 : index
      %c0_13 = arith.constant 0 : index
      %13 = vector.load %arg4[%c0_12, %c0_13] : memref<1x32xf32, #tpu.memory_space<vmem>>, vector<1x32xf32>
      %14 = vector.broadcast %13 : vector<1x32xf32> to vector<64x32xf32>
      %15 = arith.addf %12, %14 : vector<64x32xf32>
      %cst_14 = arith.constant 0.000000e+00 : f32
      %16 = vector.broadcast %cst_14 : f32 to vector<64x32xf32>
      %17 = arith.maximumf %15, %16 : vector<64x32xf32>
      %c0_15 = arith.constant 0 : index
      %c0_16 = arith.constant 0 : index
      %18 = vector.load %arg5[%c0_15, %c0_16] : memref<32x64xf32, #tpu.memory_space<vmem>>, vector<32x64xf32>
      %cst_17 = arith.constant dense<0.000000e+00> : vector<64x64xf32>
      %19 = tpu.matmul %17, %18, %cst_17 {dimension_numbers = #tpu.dot_dimension_numbers<[1], [0], [0], [1], [0, 0, 1, 1], [], []>} : vector<64x32xf32>, vector<32x64xf32>, vector<64x64xf32> -> vector<64x64xf32>
      %c0_18 = arith.constant 0 : index
      %c0_19 = arith.constant 0 : index
      %20 = vector.load %arg6[%c0_18, %c0_19] : memref<64x64xf32, #tpu.memory_space<vmem>>, vector<64x64xf32>
      tpu.vector_store %arg6[%c0_18, %c0_19], %19 {strides = array<i32>} : memref<64x64xf32, #tpu.memory_space<vmem>>, vector<64x64xf32>,
    } else {
    }
    return
  }
  func.func @transform_0(%arg0: i32, %arg1: i32) -> (i32, i32) {
    %c0_i32 = arith.constant 0 : i32
    return %arg0, %arg1 : i32, i32
  }
  func.func @transform_1(%arg0: i32, %arg1: i32) -> (i32, i32) {
    %c0_i32 = arith.constant 0 : i32
    %c0_i32_0 = arith.constant 0 : i32
    return %arg1, %c0_i32 : i32, i32
  }
  func.func @transform_2(%arg0: i32, %arg1: i32) -> (i32, i32) {
    %c0_i32 = arith.constant 0 : i32
    %c0_i32_0 = arith.constant 0 : i32
    %c0_i32_1 = arith.constant 0 : i32
    return %c0_i32, %c0_i32_0 : i32, i32
  }
  func.func @transform_3(%arg0: i32, %arg1: i32) -> (i32, i32) {
    %c0_i32 = arith.constant 0 : i32
    %c0_i32_0 = arith.constant 0 : i32
    %c0_i32_1 = arith.constant 0 : i32
    return %c0_i32, %c0_i32_0 : i32, i32
  }
  func.func @transform_4(%arg0: i32, %arg1: i32) -> (i32, i32) {
    %c0_i32 = arith.constant 0 : i32
    %c0_i32_0 = arith.constant 0 : i32
    return %arg0, %c0_i32 : i32, i32
  }
}

module attributes {stable_mosaic.version = 11 : i64} {
  func.func @gcn1_kernel(%arg0: i32, %arg1: i32, %arg2: memref<64x128xbf16, #tpu.memory_space<vmem>>, %arg3: memref<128x32xbf16, #tpu.memory_space<vmem>>, %arg4: memref<32x128xf32, #tpu.memory_space<vmem>>, %arg5: memref<1x128xf32, #tpu.memory_space<vmem>>, %arg6: memref<128x32xf32, #tpu.memory_space<vmem>>, %arg7: memref<64x32xbf16, #tpu.memory_space<vmem>>, %arg8: memref<64x32xf32, #tpu.memory_space<vmem>>) attributes {dimension_semantics = [#tpu.dimension_semantics<parallel>, #tpu.dimension_semantics<arbitrary>], iteration_bounds = array<i64: 2, 1>, scalar_prefetch = 0 : i64, scratch_operands = 1 : i64, tpu.core_type = #tpu.core_type<tc>, window_params = [{transform_indices = @transform_0, window_bounds = array<i64: 64, 128>}, {transform_indices = @transform_1, window_bounds = array<i64: 128, 32>}, {pipeline_mode = #tpu.pipeline_mode<synchronous>, transform_indices = @transform_2, window_bounds = array<i64: 32, 128>}, {pipeline_mode = #tpu.pipeline_mode<synchronous>, transform_indices = @transform_3, window_bounds = array<i64: 1, 128>}, {pipeline_mode = #tpu.pipeline_mode<synchronous>, transform_indices = @transform_4, window_bounds = array<i64: 128, 32>}, {transform_indices = @transform_5, window_bounds = array<i64: 64, 32>}]} {
    %c0_i32 = arith.constant 0 : i32
    %0 = arith.cmpi eq, %arg1, %c0_i32 : i32
    %1 = arith.extui %0 : i1 to i32
    %c0_i32_0 = arith.constant 0 : i32
    %2 = arith.cmpi ne, %1, %c0_i32_0 : i32
    scf.if %2 {
      %cst_10 = arith.constant 0.000000e+00 : f32
      %12 = vector.broadcast %cst_10 : f32 to vector<64x32xf32>
      %c0_11 = arith.constant 0 : index
      %c0_12 = arith.constant 0 : index
      %13 = vector.load %arg8[%c0_11, %c0_12] : memref<64x32xf32, #tpu.memory_space<vmem>>, vector<64x32xf32>
      tpu.vector_store %arg8[%c0_11, %c0_12], %12 {strides = array<i32>} : memref<64x32xf32, #tpu.memory_space<vmem>>, vector<64x32xf32>,
    } else {
    }
    %c0 = arith.constant 0 : index
    %c0_1 = arith.constant 0 : index
    %3 = vector.load %arg8[%c0, %c0_1] : memref<64x32xf32, #tpu.memory_space<vmem>>, vector<64x32xf32>
    %c0_2 = arith.constant 0 : index
    %c0_3 = arith.constant 0 : index
    %4 = vector.load %arg2[%c0_2, %c0_3] : memref<64x128xbf16, #tpu.memory_space<vmem>>, vector<64x128xbf16>
    %c0_4 = arith.constant 0 : index
    %c0_5 = arith.constant 0 : index
    %5 = vector.load %arg3[%c0_4, %c0_5] : memref<128x32xbf16, #tpu.memory_space<vmem>>, vector<128x32xbf16>
    %cst = arith.constant dense<0.000000e+00> : vector<64x32xf32>
    %6 = tpu.matmul %4, %5, %cst {dimension_numbers = #tpu.dot_dimension_numbers<[1], [0], [0], [1], [0, 0, 1, 1], [], []>} : vector<64x128xbf16>, vector<128x32xbf16>, vector<64x32xf32> -> vector<64x32xf32>
    %7 = arith.addf %3, %6 : vector<64x32xf32>
    %c0_6 = arith.constant 0 : index
    %c0_7 = arith.constant 0 : index
    %8 = vector.load %arg8[%c0_6, %c0_7] : memref<64x32xf32, #tpu.memory_space<vmem>>, vector<64x32xf32>
    tpu.vector_store %arg8[%c0_6, %c0_7], %7 {strides = array<i32>} : memref<64x32xf32, #tpu.memory_space<vmem>>, vector<64x32xf32>,
    %c0_i32_8 = arith.constant 0 : i32
    %9 = arith.cmpi eq, %arg1, %c0_i32_8 : i32
    %10 = arith.extui %9 : i1 to i32
    %c0_i32_9 = arith.constant 0 : i32
    %11 = arith.cmpi ne, %10, %c0_i32_9 : i32
    scf.if %11 {
      %c0_10 = arith.constant 0 : index
      %c0_11 = arith.constant 0 : index
      %12 = vector.load %arg8[%c0_10, %c0_11] : memref<64x32xf32, #tpu.memory_space<vmem>>, vector<64x32xf32>
      %c0_12 = arith.constant 0 : index
      %c0_13 = arith.constant 0 : index
      %13 = vector.load %arg4[%c0_12, %c0_13] : memref<32x128xf32, #tpu.memory_space<vmem>>, vector<32x128xf32>
      %cst_14 = arith.constant dense<0.000000e+00> : vector<64x128xf32>
      %14 = tpu.matmul %12, %13, %cst_14 {dimension_numbers = #tpu.dot_dimension_numbers<[1], [0], [0], [1], [0, 0, 1, 1], [], []>} : vector<64x32xf32>, vector<32x128xf32>, vector<64x128xf32> -> vector<64x128xf32>
      %c0_15 = arith.constant 0 : index
      %c0_16 = arith.constant 0 : index
      %15 = vector.load %arg5[%c0_15, %c0_16] : memref<1x128xf32, #tpu.memory_space<vmem>>, vector<1x128xf32>
      %16 = vector.broadcast %15 : vector<1x128xf32> to vector<64x128xf32>
      %17 = arith.addf %14, %16 : vector<64x128xf32>
      %cst_17 = arith.constant 0.000000e+00 : f32
      %18 = vector.broadcast %cst_17 : f32 to vector<64x128xf32>
      %19 = arith.maximumf %17, %18 : vector<64x128xf32>
      %c0_18 = arith.constant 0 : index
      %c0_19 = arith.constant 0 : index
      %20 = vector.load %arg6[%c0_18, %c0_19] : memref<128x32xf32, #tpu.memory_space<vmem>>, vector<128x32xf32>
      %cst_20 = arith.constant dense<0.000000e+00> : vector<64x32xf32>
      %21 = tpu.matmul %19, %20, %cst_20 {dimension_numbers = #tpu.dot_dimension_numbers<[1], [0], [0], [1], [0, 0, 1, 1], [], []>} : vector<64x128xf32>, vector<128x32xf32>, vector<64x32xf32> -> vector<64x32xf32>
      %22 = arith.truncf %21 : vector<64x32xf32> to vector<64x32xbf16>
      %c0_21 = arith.constant 0 : index
      %c0_22 = arith.constant 0 : index
      %23 = vector.load %arg7[%c0_21, %c0_22] : memref<64x32xbf16, #tpu.memory_space<vmem>>, vector<64x32xbf16>
      tpu.vector_store %arg7[%c0_21, %c0_22], %22 {strides = array<i32>} : memref<64x32xbf16, #tpu.memory_space<vmem>>, vector<64x32xbf16>,
    } else {
    }
    return
  }
  func.func @transform_0(%arg0: i32, %arg1: i32) -> (i32, i32) {
    %c0_i32 = arith.constant 0 : i32
    return %arg0, %arg1 : i32, i32
  }
  func.func @transform_1(%arg0: i32, %arg1: i32) -> (i32, i32) {
    %c0_i32 = arith.constant 0 : i32
    %c0_i32_0 = arith.constant 0 : i32
    return %arg1, %c0_i32 : i32, i32
  }
  func.func @transform_2(%arg0: i32, %arg1: i32) -> (i32, i32) {
    %c0_i32 = arith.constant 0 : i32
    %c0_i32_0 = arith.constant 0 : i32
    %c0_i32_1 = arith.constant 0 : i32
    return %c0_i32, %c0_i32_0 : i32, i32
  }
  func.func @transform_3(%arg0: i32, %arg1: i32) -> (i32, i32) {
    %c0_i32 = arith.constant 0 : i32
    %c0_i32_0 = arith.constant 0 : i32
    %c0_i32_1 = arith.constant 0 : i32
    return %c0_i32, %c0_i32_0 : i32, i32
  }
  func.func @transform_4(%arg0: i32, %arg1: i32) -> (i32, i32) {
    %c0_i32 = arith.constant 0 : i32
    %c0_i32_0 = arith.constant 0 : i32
    %c0_i32_1 = arith.constant 0 : i32
    return %c0_i32, %c0_i32_0 : i32, i32
  }
  func.func @transform_5(%arg0: i32, %arg1: i32) -> (i32, i32) {
    %c0_i32 = arith.constant 0 : i32
    %c0_i32_0 = arith.constant 0 : i32
    return %arg0, %c0_i32 : i32, i32
  }
}

module attributes {stable_mosaic.version = 11 : i64} {
  func.func @edge_head_kernel(%arg0: i32, %arg1: memref<16x32xf32, #tpu.memory_space<vmem>>, %arg2: memref<1x32xf32, #tpu.memory_space<vmem>>, %arg3: memref<32x128xf32, #tpu.memory_space<vmem>>, %arg4: memref<1x128xf32, #tpu.memory_space<vmem>>, %arg5: memref<16x128xf32, #tpu.memory_space<vmem>>) attributes {dimension_semantics = [#tpu.dimension_semantics<parallel>], iteration_bounds = array<i64: 1>, scalar_prefetch = 0 : i64, scratch_operands = 0 : i64, tpu.core_type = #tpu.core_type<tc>, window_params = [{transform_indices = @transform_0, window_bounds = array<i64: 16, 32>}, {pipeline_mode = #tpu.pipeline_mode<synchronous>, transform_indices = @transform_1, window_bounds = array<i64: 1, 32>}, {pipeline_mode = #tpu.pipeline_mode<synchronous>, transform_indices = @transform_2, window_bounds = array<i64: 32, 128>}, {pipeline_mode = #tpu.pipeline_mode<synchronous>, transform_indices = @transform_3, window_bounds = array<i64: 1, 128>}, {transform_indices = @transform_4, window_bounds = array<i64: 16, 128>}]} {
    %c0 = arith.constant 0 : index
    %c0_0 = arith.constant 0 : index
    %0 = vector.load %arg1[%c0, %c0_0] : memref<16x32xf32, #tpu.memory_space<vmem>>, vector<16x32xf32>
    %c0_1 = arith.constant 0 : index
    %c0_2 = arith.constant 0 : index
    %1 = vector.load %arg2[%c0_1, %c0_2] : memref<1x32xf32, #tpu.memory_space<vmem>>, vector<1x32xf32>
    %2 = vector.broadcast %1 : vector<1x32xf32> to vector<16x32xf32>
    %3 = arith.addf %0, %2 : vector<16x32xf32>
    %cst = arith.constant 0.000000e+00 : f32
    %4 = vector.broadcast %cst : f32 to vector<16x32xf32>
    %5 = arith.maximumf %3, %4 : vector<16x32xf32>
    %c0_3 = arith.constant 0 : index
    %c0_4 = arith.constant 0 : index
    %6 = vector.load %arg3[%c0_3, %c0_4] : memref<32x128xf32, #tpu.memory_space<vmem>>, vector<32x128xf32>
    %cst_5 = arith.constant dense<0.000000e+00> : vector<16x128xf32>
    %7 = tpu.matmul %5, %6, %cst_5 {dimension_numbers = #tpu.dot_dimension_numbers<[1], [0], [0], [1], [0, 0, 1, 1], [], []>} : vector<16x32xf32>, vector<32x128xf32>, vector<16x128xf32> -> vector<16x128xf32>
    %c0_6 = arith.constant 0 : index
    %c0_7 = arith.constant 0 : index
    %8 = vector.load %arg4[%c0_6, %c0_7] : memref<1x128xf32, #tpu.memory_space<vmem>>, vector<1x128xf32>
    %9 = vector.broadcast %8 : vector<1x128xf32> to vector<16x128xf32>
    %10 = arith.addf %7, %9 : vector<16x128xf32>
    %c0_8 = arith.constant 0 : index
    %c0_9 = arith.constant 0 : index
    %11 = vector.load %arg5[%c0_8, %c0_9] : memref<16x128xf32, #tpu.memory_space<vmem>>, vector<16x128xf32>
    tpu.vector_store %arg5[%c0_8, %c0_9], %10 {strides = array<i32>} : memref<16x128xf32, #tpu.memory_space<vmem>>, vector<16x128xf32>,
    return
  }
  func.func @transform_0(%arg0: i32) -> (i32, i32) {
    %c0_i32 = arith.constant 0 : i32
    %c0_i32_0 = arith.constant 0 : i32
    return %arg0, %c0_i32 : i32, i32
  }
  func.func @transform_1(%arg0: i32) -> (i32, i32) {
    %c0_i32 = arith.constant 0 : i32
    %c0_i32_0 = arith.constant 0 : i32
    %c0_i32_1 = arith.constant 0 : i32
    return %c0_i32, %c0_i32_0 : i32, i32
  }
  func.func @transform_2(%arg0: i32) -> (i32, i32) {
    %c0_i32 = arith.constant 0 : i32
    %c0_i32_0 = arith.constant 0 : i32
    %c0_i32_1 = arith.constant 0 : i32
    return %c0_i32, %c0_i32_0 : i32, i32
  }
  func.func @transform_3(%arg0: i32) -> (i32, i32) {
    %c0_i32 = arith.constant 0 : i32
    %c0_i32_0 = arith.constant 0 : i32
    %c0_i32_1 = arith.constant 0 : i32
    return %c0_i32, %c0_i32_0 : i32, i32
  }
  func.func @transform_4(%arg0: i32) -> (i32, i32) {
    %c0_i32 = arith.constant 0 : i32
    %c0_i32_0 = arith.constant 0 : i32
    return %arg0, %c0_i32 : i32, i32
  }
}

</mosaic_0001>

<llo_original>
// kernel: phv_forward.4
$region0: #{phv_forward.4}
  #allocation0 [shape = 'u32[]', space=smem, size = 0x4, offset = 0x4, fixed_abs, tag = 'smem constant byte address 0x4 - core index']
  #allocation1 [shape = 'u32[72,128]{1,0:T(1,128)}', space=vmem, size = 0x9000, scoped, tag = 'internal scratch']
  #allocation2 [shape = 'f32[64,32]{1,0:T(8,128)}', space=vmem, size = 0x8000, scoped, tag = 'scratch operand']
  %s0 = inlined_call_operand.vmem [shape: bf16[128,128], index: 0, kind: input, shape index: {}]
  %s1 = inlined_call_operand.vmem [shape: bf16[128,32], index: 1, kind: input, shape index: {}]
  %s2 = inlined_call_operand.vmem [shape: f32[1,32], index: 2, kind: input, shape index: {}]
  %s3 = inlined_call_operand.vmem [shape: f32[32,64], index: 3, kind: input, shape index: {}]
  %s4 = inlined_call_operand.vmem [shape: f32[128,64], index: 4, kind: output, shape index: {}]
  %s5 = sld [smem:[#allocation0]]
  $region57: #{phv_forward.4} parent=0
    _
  %s7 = ssub.s32 1, %s5
  %s8 = scalar_select 0, %s7, %s5
  loop: start=0, step=1, limit=4
  $region2: #{phv_forward.4} parent=0 // loop_pre_header
    _
  $region3: #{phv_forward.4} parent=0 // loop_header
    %s10 = sphi 0, %s14
    %p11 = scmp.ge.s32.totalorder %s10, 4
    %s17 = sphi 0, %s29
    %s18 = sphi 0, %s25
    %s19 = sphi 0, %s17
    %s20 = sphi 0, %s18
    %s21 = sphi 0, %s19
    %s22 = sphi 0, %s20
    %s34 = sphi 0, %s36
    %s37 = sphi 0, %s34
    %s38 = sphi 0, %s37
    %s54 = sphi 0, %s38
    %s60 = sphi 0, %s62
    %s63 = sphi 0, %s60
    %s64 = sphi 0, %s63
    %s80 = sphi 0, %s64
    %s84 = sphi 0, %s84
    %s86 = sphi 0, %s84
    %s87 = sphi 0, %s86
    %s101 = sphi 0, %s87
    %s105 = sphi 0, %s105
    %s107 = sphi 0, %s105
    %s108 = sphi 0, %s107
    %s122 = sphi 0, %s108
    %s128 = sphi 0, %s130
    %s131 = sphi 0, %s128
    %s132 = sphi 0, %s131
    %s148 = sphi 0, %s132
  $region4: #{phv_forward.4} parent=0 // loop_header_branch
    %13 = sbr.rel (%p11) target = $region8
  $region5: #{phv_forward.4} parent=0 // loop_body
    %s15 = ssub.s32 %s10, 1
    %s16 = ssub.s32 %s10, 2
    %s23 = sadd.s32 1, %s18
    %p24 = scmp.ge.s32.totalorder %s23, 1
    %s25 = scalar_select %p24, 0, %s23
    %s26 = sadd.s32 1, %s17
    %s27 = scalar_select %p24, %s26, %s17
    %p28 = scmp.ge.s32.totalorder %s27, 2
    %s29 = scalar_select %p28, 0, %s27
    %s30 = ssub.s32 %s17, %s29
    %s31 = ssub.s32 %s18, %s25
    %s32 = sor.u32 %s30, %s31
    %p33 = scmp.eq.s32.totalorder %s32, 0
    %s35 = sadd.s32 %s34, 1
    %s36 = scalar_select %p33, %s34, %s35
    %p39 = pneg %p33
    %p40 = scmp.eq.s32.totalorder %s10, 1
    %p41 = por %p39, %p40
    %p42 = scmp.ne.s32.totalorder %s34, %s37
    %p43 = scmp.eq.s32.totalorder %s10, 0
    %p44 = por %p42, %p43
    %p45 = scmp.ne.s32.totalorder %s34, %s37
    %p46 = scmp.eq.s32.totalorder %s15, 1
    %p47 = por %p45, %p46
    %p48 = scmp.ne.s32.totalorder %s37, %s38
    %p49 = scmp.eq.s32.totalorder %s15, 0
    %p50 = por %p48, %p49
    %p51 = scmp.ne.s32.totalorder %s37, %s38
    %p52 = scmp.eq.s32.totalorder %s16, 1
    %p53 = por %p51, %p52
    %p55 = scmp.ne.s32.totalorder %s38, %s54
    %p56 = scmp.eq.s32.totalorder %s16, 0
    %p57 = por %p55, %p56
    %s58 = ssub.s32 %s18, %s25
    %p59 = scmp.eq.s32.totalorder %s58, 0
    %s61 = sadd.s32 %s60, 1
    %s62 = scalar_select %p59, %s60, %s61
    %p65 = pneg %p59
    %p66 = scmp.eq.s32.totalorder %s10, 1
    %p67 = por %p65, %p66
    %p68 = scmp.ne.s32.totalorder %s60, %s63
    %p69 = scmp.eq.s32.totalorder %s10, 0
    %p70 = por %p68, %p69
    %p71 = scmp.ne.s32.totalorder %s60, %s63
    %p72 = scmp.eq.s32.totalorder %s15, 1
    %p73 = por %p71, %p72
    %p74 = scmp.ne.s32.totalorder %s63, %s64
    %p75 = scmp.eq.s32.totalorder %s15, 0
    %p76 = por %p74, %p75
    %p77 = scmp.ne.s32.totalorder %s63, %s64
    %p78 = scmp.eq.s32.totalorder %s16, 1
    %p79 = por %p77, %p78
    %p81 = scmp.ne.s32.totalorder %s64, %s80
    %p82 = scmp.eq.s32.totalorder %s16, 0
    %p83 = por %p81, %p82
    %s85 = sadd.s32 %s84, 1
    %p88 = scmp.eq.s32.totalorder %s10, 1
    %p89 = scmp.ne.s32.totalorder %s84, %s86
    %p90 = scmp.eq.s32.totalorder %s10, 0
    %p91 = por %p89, %p90
    %p92 = scmp.ne.s32.totalorder %s84, %s86
    %p93 = scmp.eq.s32.totalorder %s15, 1
    %p94 = por %p92, %p93
    %p95 = scmp.ne.s32.totalorder %s86, %s87
    %p96 = scmp.eq.s32.totalorder %s15, 0
    %p97 = por %p95, %p96
    %p98 = scmp.ne.s32.totalorder %s86, %s87
    %p99 = scmp.eq.s32.totalorder %s16, 1
    %p100 = por %p98, %p99
    %p102 = scmp.ne.s32.totalorder %s87, %s101
    %p103 = scmp.eq.s32.totalorder %s16, 0
    %p104 = por %p102, %p103
    %s106 = sadd.s32 %s105, 1
    %p109 = scmp.eq.s32.totalorder %s10, 1
    %p110 = scmp.ne.s32.totalorder %s105, %s107
    %p111 = scmp.eq.s32.totalorder %s10, 0
    %p112 = por %p110, %p111
    %p113 = scmp.ne.s32.totalorder %s105, %s107
    %p114 = scmp.eq.s32.totalorder %s15, 1
    %p115 = por %p113, %p114
    %p116 = scmp.ne.s32.totalorder %s107, %s108
    %p117 = scmp.eq.s32.totalorder %s15, 0
    %p118 = por %p116, %p117
    %p119 = scmp.ne.s32.totalorder %s107, %s108
    %p120 = scmp.eq.s32.totalorder %s16, 1
    %p121 = por %p119, %p120
    %p123 = scmp.ne.s32.totalorder %s108, %s122
    %p124 = scmp.eq.s32.totalorder %s16, 0
    %p125 = por %p123, %p124
    %s126 = ssub.s32 %s17, %s29
    %p127 = scmp.eq.s32.totalorder %s126, 0
    %s129 = sadd.s32 %s128, 1
    %s130 = scalar_select %p127, %s128, %s129
    %p133 = pneg %p127
    %p134 = scmp.eq.s32.totalorder %s10, 1
    %p135 = por %p133, %p134
    %p136 = scmp.ne.s32.totalorder %s128, %s131
    %p137 = scmp.eq.s32.totalorder %s10, 0
    %p138 = por %p136, %p137
    %p139 = scmp.ne.s32.totalorder %s128, %s131
    %p140 = scmp.eq.s32.totalorder %s15, 1
    %p141 = por %p139, %p140
    %p142 = scmp.ne.s32.totalorder %s131, %s132
    %p143 = scmp.eq.s32.totalorder %s15, 0
    %p144 = por %p142, %p143
    %p145 = scmp.ne.s32.totalorder %s131, %s132
    %p146 = scmp.eq.s32.totalorder %s16, 1
    %p147 = por %p145, %p146
    %p149 = scmp.ne.s32.totalorder %s132, %s148
    %p150 = scmp.eq.s32.totalorder %s16, 0
    %p151 = por %p149, %p150
    %p152 = scmp.le.s32.totalorder 1, %s10
    %p153 = scmp.lt.s32.totalorder %s10, 3
    %p154 = pnand %p152, %p153
    %p155 = pneg %p154
    // Predicated region
    $region9: #{phv_forward.4} parent=5 // pred_check
      _
    $region10: #{phv_forward.4} parent=5 // pred_check_branch
      %157 = sbr.rel (%p154) target = $region12
    $region11: #{phv_forward.4} parent=5 // pred_region
      %s158 = ssub.s32 %s10, 1
      // Predicated region
      $region13: #{phv_forward.4} parent=11 // pred_check
        %p159 = pneg %p76
      $region14: #{phv_forward.4} parent=11 // pred_check_branch
        %161 = sbr.rel (%p159) target = $region16
      $region15: #{phv_forward.4} parent=11 // pred_region
        %s162 = smul.u32 16, %s20
        %p163 = scmp.lt.s32.totalorder %s162, 15
        %s164 = scalar_select %p163, %s162, 15
        %s165 = smul.addr %s164, 4
        %s166 = scalar_lea.vmem %s1, %s165
        %s167 = smul.u32 16, %s20
      $region16: #{phv_forward.4} parent=11 // pred_fallthru
        _
      // Predicated region
      $region17: #{phv_forward.4} parent=11 // pred_check
        %p168 = pneg %p97
      $region18: #{phv_forward.4} parent=11 // pred_check_branch
        %170 = sbr.rel (%p168) target = $region20
      $region19: #{phv_forward.4} parent=11 // pred_region
        _
      $region20: #{phv_forward.4} parent=11 // pred_fallthru
        _
      // Predicated region
      $region21: #{phv_forward.4} parent=11 // pred_check
        %p171 = pneg %p118
      $region22: #{phv_forward.4} parent=11 // pred_check_branch
        %173 = sbr.rel (%p171) target = $region24
      $region23: #{phv_forward.4} parent=11 // pred_region
        _
      $region24: #{phv_forward.4} parent=11 // pred_fallthru
        _
    $region12: #{phv_forward.4} parent=5 // pred_fallthru
      _
    %p174 = scmp.lt.s32.totalorder %s10, 2
    // Predicated region
    $region25: #{phv_forward.4} parent=5 // pred_check
      %p175 = pneg %p174
    $region26: #{phv_forward.4} parent=5 // pred_check_branch
      %177 = sbr.rel (%p175) target = $region28
    $region27: #{phv_forward.4} parent=5 // pred_region
      // Predicated region
      $region29: #{phv_forward.4} parent=27 // pred_check
        %p178 = pneg %p44
      $region30: #{phv_forward.4} parent=27 // pred_check_branch
        %180 = sbr.rel (%p178) target = $region32
      $region31: #{phv_forward.4} parent=27 // pred_region
        %s181 = smul.u32 8, %s17
        %p182 = scmp.lt.s32.totalorder %s181, 15
        %s183 = scalar_select %p182, %s181, 15
        %p184 = scmp.lt.s32.totalorder %s18, 0
        %s185 = scalar_select %p184, %s18, 0
        %s186 = sadd.s32 %s185, %s183
        %s187 = smul.addr %s186, 4
        %s188 = scalar_lea.vmem %s0, %s187
        %s189 = smul.u32 8, %s17
      $region32: #{phv_forward.4} parent=27 // pred_fallthru
        _
    $region28: #{phv_forward.4} parent=5 // pred_fallthru
      _
    %p190 = scmp.le.s32.totalorder 1, %s10
    %p191 = scmp.lt.s32.totalorder %s10, 3
    %p192 = pnand %p190, %p191
    %p193 = pneg %p192
    // Predicated region
    $region33: #{phv_forward.4} parent=5 // pred_check
      _
    $region34: #{phv_forward.4} parent=5 // pred_check_branch
      %195 = sbr.rel (%p192) target = $region36
    $region35: #{phv_forward.4} parent=5 // pred_region
      %s196 = ssub.s32 %s10, 1
      %s197 = smul.u32 8, %s19
      %p198 = scmp.lt.s32.totalorder %s197, 15
      %s199 = scalar_select %p198, %s197, 15
      %p200 = scmp.lt.s32.totalorder %s20, 0
      %s201 = scalar_select %p200, %s20, 0
      %s202 = sadd.s32 %s201, %s199
      %s203 = smul.addr %s202, 4
      %s204 = scalar_lea.vmem %s0, %s203
      %p205 = pneg %p50
      %p206 = pneg %p47
      %s207 = smul.u32 16, %s20
      %p208 = scmp.lt.s32.totalorder %s207, 15
      %s209 = scalar_select %p208, %s207, 15
      %s210 = smul.addr %s209, 4
      %s211 = scalar_lea.vmem %s1, %s210
      %p212 = pneg %p76
      %p213 = pneg %p73
      %p214 = pneg %p97
      %p215 = pneg %p94
      %p216 = pneg %p118
      %p217 = pneg %p115
      %p218 = pneg %p144
      %p219 = pneg %p141
      %s220 = smul.u32 8, %s19
      %p221 = scmp.lt.s32.totalorder %s220, 15
      %s222 = scalar_select %p221, %s220, 15
      %s223 = smul.addr %s222, 8
      %s224 = scalar_lea.vmem %s4, %s223
      %s225 = smul.u32 8, %s19
      %p226 = scmp.lt.s32.totalorder %s225, 15
      %s227 = scalar_select %p226, %s225, 15
      %p228 = scmp.lt.s32.totalorder %s20, 0
      %s229 = scalar_select %p228, %s20, 0
      %s230 = sadd.s32 %s229, %s227
      %s231 = smul.addr %s230, 4
      %s232 = scalar_lea.vmem %s0, %s231
      %s233 = smul.u32 8, %s19
      %s234 = smul.u32 16, %s20
      %p235 = scmp.lt.s32.totalorder %s234, 15
      %s236 = scalar_select %p235, %s234, 15
      %s237 = smul.addr %s236, 4
      %s238 = scalar_lea.vmem %s1, %s237
      %s239 = smul.u32 16, %s20
      %s240 = smul.u32 8, %s19
      %p241 = scmp.lt.s32.totalorder %s240, 15
      %s242 = scalar_select %p241, %s240, 15
      %s243 = smul.addr %s242, 8
      %s244 = scalar_lea.vmem %s4, %s243
      %s245 = smul.u32 8, %s19
      %p246 = scmp.eq.s32.totalorder %s20, 0
      // Predicated region
      $region37: #{phv_forward.4} parent=35 // pred_check
        %p247 = pneg %p246
      $region38: #{phv_forward.4} parent=35 // pred_check_branch
        %249 = sbr.rel (%p247) target = $region40
      $region39: #{phv_forward.4} parent=35 // pred_region
        %vm250 = vcmask 261120
        %251 = vst.msk [vmem:[#allocation2] sm:$0xff] %vm250, 0.0
        %252 = vst.msk [vmem:[#allocation2 + $0x8] sm:$0xff] %vm250, 0.0
        %253 = vst.msk [vmem:[#allocation2 + $0x10] sm:$0xff] %vm250, 0.0
        %254 = vst.msk [vmem:[#allocation2 + $0x18] sm:$0xff] %vm250, 0.0
        %255 = vst.msk [vmem:[#allocation2 + $0x20] sm:$0xff] %vm250, 0.0
        %256 = vst.msk [vmem:[#allocation2 + $0x28] sm:$0xff] %vm250, 0.0
        %257 = vst.msk [vmem:[#allocation2 + $0x30] sm:$0xff] %vm250, 0.0
        %258 = vst.msk [vmem:[#allocation2 + $0x38] sm:$0xff] %vm250, 0.0
      $region40: #{phv_forward.4} parent=35 // pred_fallthru
        _
      %v259 = vld [vmem:[#allocation2] sm:$0xff]
      %v260 = vld [vmem:[#allocation2 + $0x8] sm:$0xff]
      %v261 = vld [vmem:[#allocation2 + $0x10] sm:$0xff]
      %v262 = vld [vmem:[#allocation2 + $0x18] sm:$0xff]
      %v263 = vld [vmem:[#allocation2 + $0x20] sm:$0xff]
      %v264 = vld [vmem:[#allocation2 + $0x28] sm:$0xff]
      %v265 = vld [vmem:[#allocation2 + $0x30] sm:$0xff]
      %v266 = vld [vmem:[#allocation2 + $0x38] sm:$0xff]
      %v267 = vld [vmem:[%s232] sm:$0xf]
      %v268 = vld [vmem:[%s232 + $0x4] sm:$0xf]
      %v269 = vld [vmem:[%s232 + $0x8] sm:$0xf]
      %v270 = vld [vmem:[%s232 + $0xc] sm:$0xf]
      %v271 = vld [vmem:[%s232 + $0x10] sm:$0xf]
      %v272 = vld [vmem:[%s232 + $0x14] sm:$0xf]
      %v273 = vld [vmem:[%s232 + $0x18] sm:$0xf]
      %v274 = vld [vmem:[%s232 + $0x1c] sm:$0xf]
      %v275 = vld [vmem:[%s238] sm:$0xf]
      %v276 = vld [vmem:[%s238 + $0x4] sm:$0xf]
      %v277 = vld [vmem:[%s238 + $0x8] sm:$0xf]
      %v278 = vld [vmem:[%s238 + $0xc] sm:$0xf]
      %v279 = vld [vmem:[%s238 + $0x10] sm:$0xf]
      %v280 = vld [vmem:[%s238 + $0x14] sm:$0xf]
      %v281 = vld [vmem:[%s238 + $0x18] sm:$0xf]
      %v282 = vld [vmem:[%s238 + $0x1c] sm:$0xf]
      %v283 = vld [vmem:[%s238 + $0x20] sm:$0xf]
      %v284 = vld [vmem:[%s238 + $0x24] sm:$0xf]
      %v285 = vld [vmem:[%s238 + $0x28] sm:$0xf]
      %v286 = vld [vmem:[%s238 + $0x2c] sm:$0xf]
      %v287 = vld [vmem:[%s238 + $0x30] sm:$0xf]
      %v288 = vld [vmem:[%s238 + $0x34] sm:$0xf]
      %v289 = vld [vmem:[%s238 + $0x38] sm:$0xf]
      %v290 = vld [vmem:[%s238 + $0x3c] sm:$0xf]
      %v299 = vunpack.c.l.b16 %v267
      %v300 = vunpack.c.l.b16 %v268
      %v301 = vunpack.c.l.b16 %v269
      %v302 = vunpack.c.l.b16 %v270
      %v303 = vunpack.c.l.b16 %v271
      %v304 = vunpack.c.l.b16 %v272
      %v305 = vunpack.c.l.b16 %v273
      %v306 = vunpack.c.l.b16 %v274
      %v307 = vpack.c.b16 %v300, %v299
      %v308 = vpack.c.b16 %v302, %v301
      %v309 = vpack.c.b16 %v304, %v303
      %v310 = vpack.c.b16 %v306, %v305
      %v331 = vunpack.c.l.b16 %v275
      %v332 = vunpack.c.l.b16 %v276
      %v333 = vunpack.c.l.b16 %v277
      %v334 = vunpack.c.l.b16 %v278
      %v335 = vunpack.c.l.b16 %v279
      %v336 = vunpack.c.l.b16 %v280
      %v337 = vunpack.c.l.b16 %v281
      %v338 = vunpack.c.l.b16 %v282
      %v339 = vunpack.c.l.b16 %v283
      %v340 = vunpack.c.l.b16 %v284
      %v341 = vunpack.c.l.b16 %v285
      %v342 = vunpack.c.l.b16 %v286
      %v343 = vunpack.c.l.b16 %v287
      %v344 = vunpack.c.l.b16 %v288
      %v345 = vunpack.c.l.b16 %v289
      %v346 = vunpack.c.l.b16 %v290
      %v347 = vpack.c.b16 %v332, %v331
      %v348 = vpack.c.b16 %v334, %v333
      %v349 = vpack.c.b16 %v336, %v335
      %v350 = vpack.c.b16 %v338, %v337
      %v351 = vpack.c.b16 %v340, %v339
      %v352 = vpack.c.b16 %v342, %v341
      %v353 = vpack.c.b16 %v344, %v343
      %v354 = vpack.c.b16 %v346, %v345
      %363 = vmatpush.bf16.msra.mxu0 %v354
      %364 = vmatpush.bf16.msra.mxu0 %v353
      %365 = vmatpush.bf16.msra.mxu0 %v352
      %366 = vmatpush.bf16.msra.mxu0 %v351
      %367 = vmatpush.bf16.msra.mxu0 %v350
      %368 = vmatpush.bf16.msra.mxu0 %v349
      %369 = vmatpush.bf16.msra.mxu0 %v348
      %370 = vmatpush.bf16.msra.mxu0 %v347
      %371 = vmatmul.bf16.gmra.mxu0 %v307
      %v372 = vpop.f32.mrf.mxu0
      %v373 = vadd.f32 0.0, %v372
      %v374 = vpop.f32.mrf.mxu0
      %v375 = vadd.f32 0.0, %v374
      %376 = vmatmul.bf16.gmra.mxu0 %v308
      %v377 = vpop.f32.mrf.mxu0
      %v378 = vadd.f32 0.0, %v377
      %v379 = vpop.f32.mrf.mxu0
      %v380 = vadd.f32 0.0, %v379
      %381 = vmatmul.bf16.gmra.mxu0 %v309
      %v382 = vpop.f32.mrf.mxu0
      %v383 = vadd.f32 0.0, %v382
      %v384 = vpop.f32.mrf.mxu0
      %v385 = vadd.f32 0.0, %v384
      %386 = vmatmul.bf16.gmra.mxu0 %v310
      %v387 = vpop.f32.mrf.mxu0
      %v388 = vadd.f32 0.0, %v387
      %v389 = vpop.f32.mrf.mxu0
      %v390 = vadd.f32 0.0, %v389
      %391 = vdwg.mxu0
      %v392 = vadd.f32 %v259, %v373
      %v393 = vadd.f32 %v260, %v375
      %v394 = vadd.f32 %v261, %v378
      %v395 = vadd.f32 %v262, %v380
      %v396 = vadd.f32 %v263, %v383
      %v397 = vadd.f32 %v264, %v385
      %v398 = vadd.f32 %v265, %v388
      %v399 = vadd.f32 %v266, %v390
      %vm400 = vcmask 261120
      %401 = vst.msk [vmem:[#allocation2] sm:$0xff] %vm400, %v392
      %402 = vst.msk [vmem:[#allocation2 + $0x8] sm:$0xff] %vm400, %v393
      %403 = vst.msk [vmem:[#allocation2 + $0x10] sm:$0xff] %vm400, %v394
      %404 = vst.msk [vmem:[#allocation2 + $0x18] sm:$0xff] %vm400, %v395
      %405 = vst.msk [vmem:[#allocation2 + $0x20] sm:$0xff] %vm400, %v396
      %406 = vst.msk [vmem:[#allocation2 + $0x28] sm:$0xff] %vm400, %v397
      %407 = vst.msk [vmem:[#allocation2 + $0x30] sm:$0xff] %vm400, %v398
      %408 = vst.msk [vmem:[#allocation2 + $0x38] sm:$0xff] %vm400, %v399
      // Predicated region
      $region41: #{phv_forward.4} parent=35 // pred_check
        %p409 = pneg %p246
      $region42: #{phv_forward.4} parent=35 // pred_check_branch
        %411 = sbr.rel (%p409) target = $region44
      $region43: #{phv_forward.4} parent=35 // pred_region
        %v412 = vld [vmem:[#allocation2] sm:$0xff]
        %v413 = vld [vmem:[#allocation2 + $0x8] sm:$0xff]
        %v414 = vld [vmem:[#allocation2 + $0x10] sm:$0xff]
        %v415 = vld [vmem:[#allocation2 + $0x18] sm:$0xff]
        %v416 = vld [vmem:[#allocation2 + $0x20] sm:$0xff]
        %v417 = vld [vmem:[#allocation2 + $0x28] sm:$0xff]
        %v418 = vld [vmem:[#allocation2 + $0x30] sm:$0xff]
        %v419 = vld [vmem:[#allocation2 + $0x38] sm:$0xff]
        %v420 = vld [vmem:[%s2] sm:$0x1]
        %v422 = vperm.slane %v420, 0
        %v424 = vadd.f32 %v412, %v422
        %v425 = vadd.f32 %v413, %v422
        %v426 = vadd.f32 %v414, %v422
        %v427 = vadd.f32 %v415, %v422
        %v428 = vadd.f32 %v416, %v422
        %v429 = vadd.f32 %v417, %v422
        %v430 = vadd.f32 %v418, %v422
        %v431 = vadd.f32 %v419, %v422
        %v432 = vmax.f32 %v424, 0.0
        %v433 = vmax.f32 %v425, 0.0
        %v434 = vmax.f32 %v426, 0.0
        %v435 = vmax.f32 %v427, 0.0
        %v436 = vmax.f32 %v428, 0.0
        %v437 = vmax.f32 %v429, 0.0
        %v438 = vmax.f32 %v430, 0.0
        %v439 = vmax.f32 %v431, 0.0
        %v440 = vld [vmem:[%s3] sm:$0xff]
        %v441 = vld [vmem:[%s3 + $0x8] sm:$0xff]
        %v442 = vld [vmem:[%s3 + $0x10] sm:$0xff]
        %v443 = vld [vmem:[%s3 + $0x18] sm:$0xff]
        %v445 = vsel %vm400, %v432, 0
        %v448 = vsel %vm400, %v433, 0
        %v451 = vsel %vm400, %v434, 0
        %v454 = vsel %vm400, %v435, 0
        %v457 = vsel %vm400, %v436, 0
        %v460 = vsel %vm400, %v437, 0
        %v463 = vsel %vm400, %v438, 0
        %v466 = vsel %vm400, %v439, 0
        %468 = vmatpush.msra.mxu0 0.0
        %469 = vmatpush.msra.mxu0 0.0
        %470 = vmatpush.msra.mxu0 0.0
        %471 = vmatpush.msra.mxu0 0.0
        %472 = vmatpush.msra.mxu0 0.0
        %473 = vmatpush.msra.mxu0 0.0
        %474 = vmatpush.msra.mxu0 0.0
        %475 = vmatpush.msra.mxu0 0.0
        %476 = vmatpush.msra.mxu0 0.0
        %477 = vmatpush.msra.mxu0 0.0
        %478 = vmatpush.msra.mxu0 0.0
        %479 = vmatpush.msra.mxu0 0.0
        %480 = vmatpush.msra.mxu0 %v443
        %481 = vmatpush.msra.mxu0 %v442
        %482 = vmatpush.msra.mxu0 %v441
        %483 = vmatpush.msra.mxu0 %v440
        %484 = vmatmul.f32.gmra.mxu0 %v445
        %v485 = vpop.f32.mrf.mxu0
        %v486 = vadd.f32 0.0, %v485
        %487 = vmatmul.f32.gmra.mxu0 %v448
        %v488 = vpop.f32.mrf.mxu0
        %v489 = vadd.f32 0.0, %v488
        %490 = vmatmul.f32.gmra.mxu0 %v451
        %v491 = vpop.f32.mrf.mxu0
        %v492 = vadd.f32 0.0, %v491
        %493 = vmatmul.f32.gmra.mxu0 %v454
        %v494 = vpop.f32.mrf.mxu0
        %v495 = vadd.f32 0.0, %v494
        %496 = vmatmul.f32.gmra.mxu0 %v457
        %v497 = vpop.f32.mrf.mxu0
        %v498 = vadd.f32 0.0, %v497
        %499 = vmatmul.f32.gmra.mxu0 %v460
        %v500 = vpop.f32.mrf.mxu0
        %v501 = vadd.f32 0.0, %v500
        %502 = vmatmul.f32.gmra.mxu0 %v463
        %v503 = vpop.f32.mrf.mxu0
        %v504 = vadd.f32 0.0, %v503
        %505 = vmatmul.f32.gmra.mxu0 %v466
        %v506 = vpop.f32.mrf.mxu0
        %v507 = vadd.f32 0.0, %v506
        %508 = vdwg.mxu0
        %vm509 = vcmask 523264
        %510 = vst.msk [vmem:[%s244] sm:$0xff] %vm509, %v486
        %511 = vst.msk [vmem:[%s244 + $0x8] sm:$0xff] %vm509, %v489
        %512 = vst.msk [vmem:[%s244 + $0x10] sm:$0xff] %vm509, %v492
        %513 = vst.msk [vmem:[%s244 + $0x18] sm:$0xff] %vm509, %v495
        %514 = vst.msk [vmem:[%s244 + $0x20] sm:$0xff] %vm509, %v498
        %515 = vst.msk [vmem:[%s244 + $0x28] sm:$0xff] %vm509, %v501
        %516 = vst.msk [vmem:[%s244 + $0x30] sm:$0xff] %vm509, %v504
        %517 = vst.msk [vmem:[%s244 + $0x38] sm:$0xff] %vm509, %v507
      $region44: #{phv_forward.4} parent=35 // pred_fallthru
        _
      %s518 = smul.u32 8, %s19
      %p519 = scmp.lt.s32.totalorder %s518, 15
      %s520 = scalar_select %p519, %s518, 15
      %s521 = smul.addr %s520, 8
      %s522 = scalar_lea.vmem %s4, %s521
      // Predicated region
      $region45: #{phv_forward.4} parent=35 // pred_check
        %p523 = pneg %p141
      $region46: #{phv_forward.4} parent=35 // pred_check_branch
        %525 = sbr.rel (%p523) target = $region48
      $region47: #{phv_forward.4} parent=35 // pred_region
        %s526 = smul.u32 8, %s19
      $region48: #{phv_forward.4} parent=35 // pred_fallthru
        _
    $region36: #{phv_forward.4} parent=5 // pred_fallthru
      _
    %p527 = scmp.le.s32.totalorder 2, %s10
    // Predicated region
    $region49: #{phv_forward.4} parent=5 // pred_check
      %p528 = pneg %p527
    $region50: #{phv_forward.4} parent=5 // pred_check_branch
      %530 = sbr.rel (%p528) target = $region52
    $region51: #{phv_forward.4} parent=5 // pred_region
      %s531 = ssub.s32 %s10, 2
      // Predicated region
      $region53: #{phv_forward.4} parent=51 // pred_check
        %p532 = pneg %p147
      $region54: #{phv_forward.4} parent=51 // pred_check_branch
        %534 = sbr.rel (%p532) target = $region56
      $region55: #{phv_forward.4} parent=51 // pred_region
        %s535 = smul.u32 8, %s21
        %p536 = scmp.lt.s32.totalorder %s535, 15
        %s537 = scalar_select %p536, %s535, 15
        %s538 = smul.addr %s537, 8
        %s539 = scalar_lea.vmem %s4, %s538
      $region56: #{phv_forward.4} parent=51 // pred_fallthru
        _
    $region52: #{phv_forward.4} parent=5 // pred_fallthru
      _
  $region6: #{phv_forward.4} parent=0 // loop_footer
    %s14 = sadd.s32 1, %s10
  $region7: #{phv_forward.4} parent=0 // loop_footer_branch
    %9 = sbr.rel target = $region3
  $region8: #{phv_forward.4} parent=0 // loop_exit
    _

// kernel: phv_forward.5
$region0: #{phv_forward.5}
  #allocation0 [shape = 'u32[]', space=smem, size = 0x4, offset = 0x4, fixed_abs, tag = 'smem constant byte address 0x4 - core index']
  #allocation1 [shape = 'u32[72,128]{1,0:T(1,128)}', space=vmem, size = 0x9000, scoped, tag = 'internal scratch']
  %s0 = inlined_call_operand.vmem [shape: f32[16,32], index: 0, kind: input, shape index: {}]
  %s1 = inlined_call_operand.vmem [shape: f32[1,32], index: 1, kind: input, shape index: {}]
  %s2 = inlined_call_operand.vmem [shape: f32[32,128], index: 2, kind: input, shape index: {}]
  %s3 = inlined_call_operand.vmem [shape: f32[1,128], index: 3, kind: input, shape index: {}]
  %s4 = inlined_call_operand.vmem [shape: f32[16,128], index: 4, kind: output, shape index: {}]
  %s5 = sld [smem:[#allocation0]]
  $region26: #{phv_forward.5} parent=0
    _
  %s7 = ssub.s32 1, %s5
  %s8 = scalar_select 0, %s7, %s5
  // Predicated region
  $region2: #{phv_forward.5} parent=0 // pred_check
    _
  $region3: #{phv_forward.5} parent=0 // pred_check_branch
    %10 = sbr.rel (0) target = $region5
  $region4: #{phv_forward.5} parent=0 // pred_region
    _
  $region5: #{phv_forward.5} parent=0 // pred_fallthru
    _
  // Predicated region
  $region6: #{phv_forward.5} parent=0 // pred_check
    _
  $region7: #{phv_forward.5} parent=0 // pred_check_branch
    %12 = sbr.rel (0) target = $region9
  $region8: #{phv_forward.5} parent=0 // pred_region
    _
  $region9: #{phv_forward.5} parent=0 // pred_fallthru
    _
  // Predicated region
  $region10: #{phv_forward.5} parent=0 // pred_check
    _
  $region11: #{phv_forward.5} parent=0 // pred_check_branch
    %14 = sbr.rel (0) target = $region13
  $region12: #{phv_forward.5} parent=0 // pred_region
    _
  $region13: #{phv_forward.5} parent=0 // pred_fallthru
    _
  // Predicated region
  $region14: #{phv_forward.5} parent=0 // pred_check
    _
  $region15: #{phv_forward.5} parent=0 // pred_check_branch
    %16 = sbr.rel (0) target = $region17
  $region16: #{phv_forward.5} parent=0 // pred_region
    _
  $region17: #{phv_forward.5} parent=0 // pred_fallthru
    _
  %v17 = vld [vmem:[%s0] sm:$0xff]
  %v18 = vld [vmem:[%s0 + $0x8] sm:$0xff]
  %v19 = vld [vmem:[%s1] sm:$0x1]
  %v21 = vperm.slane %v19, 0
  %v23 = vadd.f32 %v17, %v21
  %v24 = vadd.f32 %v18, %v21
  %v25 = vmax.f32 %v23, 0.0
  %v26 = vmax.f32 %v24, 0.0
  %v27 = vld [vmem:[%s2] sm:$0xff]
  %v28 = vld [vmem:[%s2 + $0x8] sm:$0xff]
  %v29 = vld [vmem:[%s2 + $0x10] sm:$0xff]
  %v30 = vld [vmem:[%s2 + $0x18] sm:$0xff]
  %v31 = vld [vmem:[%s3] sm:$0x1]
  %v33 = vperm.slane %v31, 0
  %vm35 = vcmask 261120
  %v37 = vsel %vm35, %v25, 0
  %v40 = vsel %vm35, %v26, 0
  %42 = vmatpush.msra.mxu0 0.0
  %43 = vmatpush.msra.mxu0 0.0
  %44 = vmatpush.msra.mxu0 0.0
  %45 = vmatpush.msra.mxu0 0.0
  %46 = vmatpush.msra.mxu0 0.0
  %47 = vmatpush.msra.mxu0 0.0
  %48 = vmatpush.msra.mxu0 0.0
  %49 = vmatpush.msra.mxu0 0.0
  %50 = vmatpush.msra.mxu0 0.0
  %51 = vmatpush.msra.mxu0 0.0
  %52 = vmatpush.msra.mxu0 0.0
  %53 = vmatpush.msra.mxu0 0.0
  %54 = vmatpush.msra.mxu0 %v30
  %55 = vmatpush.msra.mxu0 %v29
  %56 = vmatpush.msra.mxu0 %v28
  %57 = vmatpush.msra.mxu0 %v27
  %58 = vmatmul.f32.gmra.mxu0 %v37
  %v59 = vpop.f32.mrf.mxu0
  %v60 = vadd.f32 %v33, %v59
  %61 = vmatmul.f32.gmra.mxu0 %v40
  %v62 = vpop.f32.mrf.mxu0
  %v63 = vadd.f32 %v33, %v62
  %64 = vdwg.mxu0
  %65 = vst [vmem:[%s4] sm:$0xff] %v60
  %66 = vst [vmem:[%s4 + $0x8] sm:$0xff] %v63
  // Predicated region
  $region18: #{phv_forward.5} parent=0 // pred_check
    _
  $region19: #{phv_forward.5} parent=0 // pred_check_branch
    %68 = sbr.rel (0) target = $region21
  $region20: #{phv_forward.5} parent=0 // pred_region
    _
  $region21: #{phv_forward.5} parent=0 // pred_fallthru
    _
  // Predicated region
  $region22: #{phv_forward.5} parent=0 // pred_check
    _
  $region23: #{phv_forward.5} parent=0 // pred_check_branch
    %70 = sbr.rel (0) target = $region25
  $region24: #{phv_forward.5} parent=0 // pred_region
    _
  $region25: #{phv_forward.5} parent=0 // pred_fallthru
    _

// kernel: phv_forward.3
$region0: #{phv_forward.3}
  #allocation0 [shape = 'u32[]', space=smem, size = 0x4, offset = 0x4, fixed_abs, tag = 'smem constant byte address 0x4 - core index']
  #allocation1 [shape = 'u32[72,128]{1,0:T(1,128)}', space=vmem, size = 0x9000, scoped, tag = 'internal scratch']
  #allocation2 [shape = 'f32[64,32]{1,0:T(8,128)}', space=vmem, size = 0x8000, scoped, tag = 'scratch operand']
  %s0 = inlined_call_operand.vmem [shape: bf16[128,128], index: 0, kind: input, shape index: {}]
  %s1 = inlined_call_operand.vmem [shape: bf16[128,32], index: 1, kind: input, shape index: {}]
  %s2 = inlined_call_operand.vmem [shape: f32[32,128], index: 2, kind: input, shape index: {}]
  %s3 = inlined_call_operand.vmem [shape: f32[1,128], index: 3, kind: input, shape index: {}]
  %s4 = inlined_call_operand.vmem [shape: f32[128,32], index: 4, kind: input, shape index: {}]
  %s5 = inlined_call_operand.vmem [shape: bf16[128,32], index: 5, kind: output, shape index: {}]
  %s6 = sld [smem:[#allocation0]]
  $region61: #{phv_forward.3} parent=0
    _
  %s8 = ssub.s32 1, %s6
  %s9 = scalar_select 0, %s8, %s6
  loop: start=0, step=1, limit=4
  $region2: #{phv_forward.3} parent=0 // loop_pre_header
    _
  $region3: #{phv_forward.3} parent=0 // loop_header
    %s11 = sphi 0, %s15
    %p12 = scmp.ge.s32.totalorder %s11, 4
    %s18 = sphi 0, %s30
    %s19 = sphi 0, %s26
    %s20 = sphi 0, %s18
    %s21 = sphi 0, %s19
    %s22 = sphi 0, %s20
    %s23 = sphi 0, %s21
    %s35 = sphi 0, %s37
    %s38 = sphi 0, %s35
    %s39 = sphi 0, %s38
    %s55 = sphi 0, %s39
    %s61 = sphi 0, %s63
    %s64 = sphi 0, %s61
    %s65 = sphi 0, %s64
    %s81 = sphi 0, %s65
    %s85 = sphi 0, %s85
    %s87 = sphi 0, %s85
    %s88 = sphi 0, %s87
    %s102 = sphi 0, %s88
    %s106 = sphi 0, %s106
    %s108 = sphi 0, %s106
    %s109 = sphi 0, %s108
    %s123 = sphi 0, %s109
    %s127 = sphi 0, %s127
    %s129 = sphi 0, %s127
    %s130 = sphi 0, %s129
    %s144 = sphi 0, %s130
    %s150 = sphi 0, %s152
    %s153 = sphi 0, %s150
    %s154 = sphi 0, %s153
    %s170 = sphi 0, %s154
  $region4: #{phv_forward.3} parent=0 // loop_header_branch
    %14 = sbr.rel (%p12) target = $region8
  $region5: #{phv_forward.3} parent=0 // loop_body
    %s16 = ssub.s32 %s11, 1
    %s17 = ssub.s32 %s11, 2
    %s24 = sadd.s32 1, %s19
    %p25 = scmp.ge.s32.totalorder %s24, 1
    %s26 = scalar_select %p25, 0, %s24
    %s27 = sadd.s32 1, %s18
    %s28 = scalar_select %p25, %s27, %s18
    %p29 = scmp.ge.s32.totalorder %s28, 2
    %s30 = scalar_select %p29, 0, %s28
    %s31 = ssub.s32 %s18, %s30
    %s32 = ssub.s32 %s19, %s26
    %s33 = sor.u32 %s31, %s32
    %p34 = scmp.eq.s32.totalorder %s33, 0
    %s36 = sadd.s32 %s35, 1
    %s37 = scalar_select %p34, %s35, %s36
    %p40 = pneg %p34
    %p41 = scmp.eq.s32.totalorder %s11, 1
    %p42 = por %p40, %p41
    %p43 = scmp.ne.s32.totalorder %s35, %s38
    %p44 = scmp.eq.s32.totalorder %s11, 0
    %p45 = por %p43, %p44
    %p46 = scmp.ne.s32.totalorder %s35, %s38
    %p47 = scmp.eq.s32.totalorder %s16, 1
    %p48 = por %p46, %p47
    %p49 = scmp.ne.s32.totalorder %s38, %s39
    %p50 = scmp.eq.s32.totalorder %s16, 0
    %p51 = por %p49, %p50
    %p52 = scmp.ne.s32.totalorder %s38, %s39
    %p53 = scmp.eq.s32.totalorder %s17, 1
    %p54 = por %p52, %p53
    %p56 = scmp.ne.s32.totalorder %s39, %s55
    %p57 = scmp.eq.s32.totalorder %s17, 0
    %p58 = por %p56, %p57
    %s59 = ssub.s32 %s19, %s26
    %p60 = scmp.eq.s32.totalorder %s59, 0
    %s62 = sadd.s32 %s61, 1
    %s63 = scalar_select %p60, %s61, %s62
    %p66 = pneg %p60
    %p67 = scmp.eq.s32.totalorder %s11, 1
    %p68 = por %p66, %p67
    %p69 = scmp.ne.s32.totalorder %s61, %s64
    %p70 = scmp.eq.s32.totalorder %s11, 0
    %p71 = por %p69, %p70
    %p72 = scmp.ne.s32.totalorder %s61, %s64
    %p73 = scmp.eq.s32.totalorder %s16, 1
    %p74 = por %p72, %p73
    %p75 = scmp.ne.s32.totalorder %s64, %s65
    %p76 = scmp.eq.s32.totalorder %s16, 0
    %p77 = por %p75, %p76
    %p78 = scmp.ne.s32.totalorder %s64, %s65
    %p79 = scmp.eq.s32.totalorder %s17, 1
    %p80 = por %p78, %p79
    %p82 = scmp.ne.s32.totalorder %s65, %s81
    %p83 = scmp.eq.s32.totalorder %s17, 0
    %p84 = por %p82, %p83
    %s86 = sadd.s32 %s85, 1
    %p89 = scmp.eq.s32.totalorder %s11, 1
    %p90 = scmp.ne.s32.totalorder %s85, %s87
    %p91 = scmp.eq.s32.totalorder %s11, 0
    %p92 = por %p90, %p91
    %p93 = scmp.ne.s32.totalorder %s85, %s87
    %p94 = scmp.eq.s32.totalorder %s16, 1
    %p95 = por %p93, %p94
    %p96 = scmp.ne.s32.totalorder %s87, %s88
    %p97 = scmp.eq.s32.totalorder %s16, 0
    %p98 = por %p96, %p97
    %p99 = scmp.ne.s32.totalorder %s87, %s88
    %p100 = scmp.eq.s32.totalorder %s17, 1
    %p101 = por %p99, %p100
    %p103 = scmp.ne.s32.totalorder %s88, %s102
    %p104 = scmp.eq.s32.totalorder %s17, 0
    %p105 = por %p103, %p104
    %s107 = sadd.s32 %s106, 1
    %p110 = scmp.eq.s32.totalorder %s11, 1
    %p111 = scmp.ne.s32.totalorder %s106, %s108
    %p112 = scmp.eq.s32.totalorder %s11, 0
    %p113 = por %p111, %p112
    %p114 = scmp.ne.s32.totalorder %s106, %s108
    %p115 = scmp.eq.s32.totalorder %s16, 1
    %p116 = por %p114, %p115
    %p117 = scmp.ne.s32.totalorder %s108, %s109
    %p118 = scmp.eq.s32.totalorder %s16, 0
    %p119 = por %p117, %p118
    %p120 = scmp.ne.s32.totalorder %s108, %s109
    %p121 = scmp.eq.s32.totalorder %s17, 1
    %p122 = por %p120, %p121
    %p124 = scmp.ne.s32.totalorder %s109, %s123
    %p125 = scmp.eq.s32.totalorder %s17, 0
    %p126 = por %p124, %p125
    %s128 = sadd.s32 %s127, 1
    %p131 = scmp.eq.s32.totalorder %s11, 1
    %p132 = scmp.ne.s32.totalorder %s127, %s129
    %p133 = scmp.eq.s32.totalorder %s11, 0
    %p134 = por %p132, %p133
    %p135 = scmp.ne.s32.totalorder %s127, %s129
    %p136 = scmp.eq.s32.totalorder %s16, 1
    %p137 = por %p135, %p136
    %p138 = scmp.ne.s32.totalorder %s129, %s130
    %p139 = scmp.eq.s32.totalorder %s16, 0
    %p140 = por %p138, %p139
    %p141 = scmp.ne.s32.totalorder %s129, %s130
    %p142 = scmp.eq.s32.totalorder %s17, 1
    %p143 = por %p141, %p142
    %p145 = scmp.ne.s32.totalorder %s130, %s144
    %p146 = scmp.eq.s32.totalorder %s17, 0
    %p147 = por %p145, %p146
    %s148 = ssub.s32 %s18, %s30
    %p149 = scmp.eq.s32.totalorder %s148, 0
    %s151 = sadd.s32 %s150, 1
    %s152 = scalar_select %p149, %s150, %s151
    %p155 = pneg %p149
    %p156 = scmp.eq.s32.totalorder %s11, 1
    %p157 = por %p155, %p156
    %p158 = scmp.ne.s32.totalorder %s150, %s153
    %p159 = scmp.eq.s32.totalorder %s11, 0
    %p160 = por %p158, %p159
    %p161 = scmp.ne.s32.totalorder %s150, %s153
    %p162 = scmp.eq.s32.totalorder %s16, 1
    %p163 = por %p161, %p162
    %p164 = scmp.ne.s32.totalorder %s153, %s154
    %p165 = scmp.eq.s32.totalorder %s16, 0
    %p166 = por %p164, %p165
    %p167 = scmp.ne.s32.totalorder %s153, %s154
    %p168 = scmp.eq.s32.totalorder %s17, 1
    %p169 = por %p167, %p168
    %p171 = scmp.ne.s32.totalorder %s154, %s170
    %p172 = scmp.eq.s32.totalorder %s17, 0
    %p173 = por %p171, %p172
    %p174 = scmp.le.s32.totalorder 1, %s11
    %p175 = scmp.lt.s32.totalorder %s11, 3
    %p176 = pnand %p174, %p175
    %p177 = pneg %p176
    // Predicated region
    $region9: #{phv_forward.3} parent=5 // pred_check
      _
    $region10: #{phv_forward.3} parent=5 // pred_check_branch
      %179 = sbr.rel (%p176) target = $region12
    $region11: #{phv_forward.3} parent=5 // pred_region
      %s180 = ssub.s32 %s11, 1
      // Predicated region
      $region13: #{phv_forward.3} parent=11 // pred_check
        %p181 = pneg %p77
      $region14: #{phv_forward.3} parent=11 // pred_check_branch
        %183 = sbr.rel (%p181) target = $region16
      $region15: #{phv_forward.3} parent=11 // pred_region
        %s184 = smul.u32 16, %s21
        %p185 = scmp.lt.s32.totalorder %s184, 15
        %s186 = scalar_select %p185, %s184, 15
        %s187 = smul.addr %s186, 4
        %s188 = scalar_lea.vmem %s1, %s187
        %s189 = smul.u32 16, %s21
      $region16: #{phv_forward.3} parent=11 // pred_fallthru
        _
      // Predicated region
      $region17: #{phv_forward.3} parent=11 // pred_check
        %p190 = pneg %p98
      $region18: #{phv_forward.3} parent=11 // pred_check_branch
        %192 = sbr.rel (%p190) target = $region20
      $region19: #{phv_forward.3} parent=11 // pred_region
        _
      $region20: #{phv_forward.3} parent=11 // pred_fallthru
        _
      // Predicated region
      $region21: #{phv_forward.3} parent=11 // pred_check
        %p193 = pneg %p119
      $region22: #{phv_forward.3} parent=11 // pred_check_branch
        %195 = sbr.rel (%p193) target = $region24
      $region23: #{phv_forward.3} parent=11 // pred_region
        _
      $region24: #{phv_forward.3} parent=11 // pred_fallthru
        _
      // Predicated region
      $region25: #{phv_forward.3} parent=11 // pred_check
        %p196 = pneg %p140
      $region26: #{phv_forward.3} parent=11 // pred_check_branch
        %198 = sbr.rel (%p196) target = $region28
      $region27: #{phv_forward.3} parent=11 // pred_region
        _
      $region28: #{phv_forward.3} parent=11 // pred_fallthru
        _
    $region12: #{phv_forward.3} parent=5 // pred_fallthru
      _
    %p199 = scmp.lt.s32.totalorder %s11, 2
    // Predicated region
    $region29: #{phv_forward.3} parent=5 // pred_check
      %p200 = pneg %p199
    $region30: #{phv_forward.3} parent=5 // pred_check_branch
      %202 = sbr.rel (%p200) target = $region32
    $region31: #{phv_forward.3} parent=5 // pred_region
      // Predicated region
      $region33: #{phv_forward.3} parent=31 // pred_check
        %p203 = pneg %p45
      $region34: #{phv_forward.3} parent=31 // pred_check_branch
        %205 = sbr.rel (%p203) target = $region36
      $region35: #{phv_forward.3} parent=31 // pred_region
        %s206 = smul.u32 8, %s18
        %p207 = scmp.lt.s32.totalorder %s206, 15
        %s208 = scalar_select %p207, %s206, 15
        %p209 = scmp.lt.s32.totalorder %s19, 0
        %s210 = scalar_select %p209, %s19, 0
        %s211 = sadd.s32 %s210, %s208
        %s212 = smul.addr %s211, 4
        %s213 = scalar_lea.vmem %s0, %s212
        %s214 = smul.u32 8, %s18
      $region36: #{phv_forward.3} parent=31 // pred_fallthru
        _
    $region32: #{phv_forward.3} parent=5 // pred_fallthru
      _
    %p215 = scmp.le.s32.totalorder 1, %s11
    %p216 = scmp.lt.s32.totalorder %s11, 3
    %p217 = pnand %p215, %p216
    %p218 = pneg %p217
    // Predicated region
    $region37: #{phv_forward.3} parent=5 // pred_check
      _
    $region38: #{phv_forward.3} parent=5 // pred_check_branch
      %220 = sbr.rel (%p217) target = $region40
    $region39: #{phv_forward.3} parent=5 // pred_region
      %s221 = ssub.s32 %s11, 1
      %s222 = smul.u32 8, %s20
      %p223 = scmp.lt.s32.totalorder %s222, 15
      %s224 = scalar_select %p223, %s222, 15
      %p225 = scmp.lt.s32.totalorder %s21, 0
      %s226 = scalar_select %p225, %s21, 0
      %s227 = sadd.s32 %s226, %s224
      %s228 = smul.addr %s227, 4
      %s229 = scalar_lea.vmem %s0, %s228
      %p230 = pneg %p51
      %p231 = pneg %p48
      %s232 = smul.u32 16, %s21
      %p233 = scmp.lt.s32.totalorder %s232, 15
      %s234 = scalar_select %p233, %s232, 15
      %s235 = smul.addr %s234, 4
      %s236 = scalar_lea.vmem %s1, %s235
      %p237 = pneg %p77
      %p238 = pneg %p74
      %p239 = pneg %p98
      %p240 = pneg %p95
      %p241 = pneg %p119
      %p242 = pneg %p116
      %p243 = pneg %p140
      %p244 = pneg %p137
      %p245 = pneg %p166
      %p246 = pneg %p163
      %s247 = smul.u32 8, %s20
      %p248 = scmp.lt.s32.totalorder %s247, 15
      %s249 = scalar_select %p248, %s247, 15
      %s250 = smul.addr %s249, 4
      %s251 = scalar_lea.vmem %s5, %s250
      %s252 = smul.u32 8, %s20
      %p253 = scmp.lt.s32.totalorder %s252, 15
      %s254 = scalar_select %p253, %s252, 15
      %p255 = scmp.lt.s32.totalorder %s21, 0
      %s256 = scalar_select %p255, %s21, 0
      %s257 = sadd.s32 %s256, %s254
      %s258 = smul.addr %s257, 4
      %s259 = scalar_lea.vmem %s0, %s258
      %s260 = smul.u32 8, %s20
      %s261 = smul.u32 16, %s21
      %p262 = scmp.lt.s32.totalorder %s261, 15
      %s263 = scalar_select %p262, %s261, 15
      %s264 = smul.addr %s263, 4
      %s265 = scalar_lea.vmem %s1, %s264
      %s266 = smul.u32 16, %s21
      %s267 = smul.u32 8, %s20
      %p268 = scmp.lt.s32.totalorder %s267, 15
      %s269 = scalar_select %p268, %s267, 15
      %s270 = smul.addr %s269, 4
      %s271 = scalar_lea.vmem %s5, %s270
      %s272 = smul.u32 8, %s20
      %p273 = scmp.eq.s32.totalorder %s21, 0
      // Predicated region
      $region41: #{phv_forward.3} parent=39 // pred_check
        %p274 = pneg %p273
      $region42: #{phv_forward.3} parent=39 // pred_check_branch
        %276 = sbr.rel (%p274) target = $region44
      $region43: #{phv_forward.3} parent=39 // pred_region
        %vm277 = vcmask 261120
        %278 = vst.msk [vmem:[#allocation2] sm:$0xff] %vm277, 0.0
        %279 = vst.msk [vmem:[#allocation2 + $0x8] sm:$0xff] %vm277, 0.0
        %280 = vst.msk [vmem:[#allocation2 + $0x10] sm:$0xff] %vm277, 0.0
        %281 = vst.msk [vmem:[#allocation2 + $0x18] sm:$0xff] %vm277, 0.0
        %282 = vst.msk [vmem:[#allocation2 + $0x20] sm:$0xff] %vm277, 0.0
        %283 = vst.msk [vmem:[#allocation2 + $0x28] sm:$0xff] %vm277, 0.0
        %284 = vst.msk [vmem:[#allocation2 + $0x30] sm:$0xff] %vm277, 0.0
        %285 = vst.msk [vmem:[#allocation2 + $0x38] sm:$0xff] %vm277, 0.0
      $region44: #{phv_forward.3} parent=39 // pred_fallthru
        _
      %v286 = vld [vmem:[#allocation2] sm:$0xff]
      %v287 = vld [vmem:[#allocation2 + $0x8] sm:$0xff]
      %v288 = vld [vmem:[#allocation2 + $0x10] sm:$0xff]
      %v289 = vld [vmem:[#allocation2 + $0x18] sm:$0xff]
      %v290 = vld [vmem:[#allocation2 + $0x20] sm:$0xff]
      %v291 = vld [vmem:[#allocation2 + $0x28] sm:$0xff]
      %v292 = vld [vmem:[#allocation2 + $0x30] sm:$0xff]
      %v293 = vld [vmem:[#allocation2 + $0x38] sm:$0xff]
      %v294 = vld [vmem:[%s259] sm:$0xf]
      %v295 = vld [vmem:[%s259 + $0x4] sm:$0xf]
      %v296 = vld [vmem:[%s259 + $0x8] sm:$0xf]
      %v297 = vld [vmem:[%s259 + $0xc] sm:$0xf]
      %v298 = vld [vmem:[%s259 + $0x10] sm:$0xf]
      %v299 = vld [vmem:[%s259 + $0x14] sm:$0xf]
      %v300 = vld [vmem:[%s259 + $0x18] sm:$0xf]
      %v301 = vld [vmem:[%s259 + $0x1c] sm:$0xf]
      %v302 = vld [vmem:[%s265] sm:$0xf]
      %v303 = vld [vmem:[%s265 + $0x4] sm:$0xf]
      %v304 = vld [vmem:[%s265 + $0x8] sm:$0xf]
      %v305 = vld [vmem:[%s265 + $0xc] sm:$0xf]
      %v306 = vld [vmem:[%s265 + $0x10] sm:$0xf]
      %v307 = vld [vmem:[%s265 + $0x14] sm:$0xf]
      %v308 = vld [vmem:[%s265 + $0x18] sm:$0xf]
      %v309 = vld [vmem:[%s265 + $0x1c] sm:$0xf]
      %v310 = vld [vmem:[%s265 + $0x20] sm:$0xf]
      %v311 = vld [vmem:[%s265 + $0x24] sm:$0xf]
      %v312 = vld [vmem:[%s265 + $0x28] sm:$0xf]
      %v313 = vld [vmem:[%s265 + $0x2c] sm:$0xf]
      %v314 = vld [vmem:[%s265 + $0x30] sm:$0xf]
      %v315 = vld [vmem:[%s265 + $0x34] sm:$0xf]
      %v316 = vld [vmem:[%s265 + $0x38] sm:$0xf]
      %v317 = vld [vmem:[%s265 + $0x3c] sm:$0xf]
      %v326 = vunpack.c.l.b16 %v294
      %v327 = vunpack.c.l.b16 %v295
      %v328 = vunpack.c.l.b16 %v296
      %v329 = vunpack.c.l.b16 %v297
      %v330 = vunpack.c.l.b16 %v298
      %v331 = vunpack.c.l.b16 %v299
      %v332 = vunpack.c.l.b16 %v300
      %v333 = vunpack.c.l.b16 %v301
      %v334 = vpack.c.b16 %v327, %v326
      %v335 = vpack.c.b16 %v329, %v328
      %v336 = vpack.c.b16 %v331, %v330
      %v337 = vpack.c.b16 %v333, %v332
      %v358 = vunpack.c.l.b16 %v302
      %v359 = vunpack.c.l.b16 %v303
      %v360 = vunpack.c.l.b16 %v304
      %v361 = vunpack.c.l.b16 %v305
      %v362 = vunpack.c.l.b16 %v306
      %v363 = vunpack.c.l.b16 %v307
      %v364 = vunpack.c.l.b16 %v308
      %v365 = vunpack.c.l.b16 %v309
      %v366 = vunpack.c.l.b16 %v310
      %v367 = vunpack.c.l.b16 %v311
      %v368 = vunpack.c.l.b16 %v312
      %v369 = vunpack.c.l.b16 %v313
      %v370 = vunpack.c.l.b16 %v314
      %v371 = vunpack.c.l.b16 %v315
      %v372 = vunpack.c.l.b16 %v316
      %v373 = vunpack.c.l.b16 %v317
      %v374 = vpack.c.b16 %v359, %v358
      %v375 = vpack.c.b16 %v361, %v360
      %v376 = vpack.c.b16 %v363, %v362
      %v377 = vpack.c.b16 %v365, %v364
      %v378 = vpack.c.b16 %v367, %v366
      %v379 = vpack.c.b16 %v369, %v368
      %v380 = vpack.c.b16 %v371, %v370
      %v381 = vpack.c.b16 %v373, %v372
      %390 = vmatpush.bf16.msra.mxu0 %v381
      %391 = vmatpush.bf16.msra.mxu0 %v380
      %392 = vmatpush.bf16.msra.mxu0 %v379
      %393 = vmatpush.bf16.msra.mxu0 %v378
      %394 = vmatpush.bf16.msra.mxu0 %v377
      %395 = vmatpush.bf16.msra.mxu0 %v376
      %396 = vmatpush.bf16.msra.mxu0 %v375
      %397 = vmatpush.bf16.msra.mxu0 %v374
      %398 = vmatmul.bf16.gmra.mxu0 %v334
      %v399 = vpop.f32.mrf.mxu0
      %v400 = vadd.f32 0.0, %v399
      %v401 = vpop.f32.mrf.mxu0
      %v402 = vadd.f32 0.0, %v401
      %403 = vmatmul.bf16.gmra.mxu0 %v335
      %v404 = vpop.f32.mrf.mxu0
      %v405 = vadd.f32 0.0, %v404
      %v406 = vpop.f32.mrf.mxu0
      %v407 = vadd.f32 0.0, %v406
      %408 = vmatmul.bf16.gmra.mxu0 %v336
      %v409 = vpop.f32.mrf.mxu0
      %v410 = vadd.f32 0.0, %v409
      %v411 = vpop.f32.mrf.mxu0
      %v412 = vadd.f32 0.0, %v411
      %413 = vmatmul.bf16.gmra.mxu0 %v337
      %v414 = vpop.f32.mrf.mxu0
      %v415 = vadd.f32 0.0, %v414
      %v416 = vpop.f32.mrf.mxu0
      %v417 = vadd.f32 0.0, %v416
      %418 = vdwg.mxu0
      %v419 = vadd.f32 %v286, %v400
      %v420 = vadd.f32 %v287, %v402
      %v421 = vadd.f32 %v288, %v405
      %v422 = vadd.f32 %v289, %v407
      %v423 = vadd.f32 %v290, %v410
      %v424 = vadd.f32 %v291, %v412
      %v425 = vadd.f32 %v292, %v415
      %v426 = vadd.f32 %v293, %v417
      %vm427 = vcmask 261120
      %428 = vst.msk [vmem:[#allocation2] sm:$0xff] %vm427, %v419
      %429 = vst.msk [vmem:[#allocation2 + $0x8] sm:$0xff] %vm427, %v420
      %430 = vst.msk [vmem:[#allocation2 + $0x10] sm:$0xff] %vm427, %v421
      %431 = vst.msk [vmem:[#allocation2 + $0x18] sm:$0xff] %vm427, %v422
      %432 = vst.msk [vmem:[#allocation2 + $0x20] sm:$0xff] %vm427, %v423
      %433 = vst.msk [vmem:[#allocation2 + $0x28] sm:$0xff] %vm427, %v424
      %434 = vst.msk [vmem:[#allocation2 + $0x30] sm:$0xff] %vm427, %v425
      %435 = vst.msk [vmem:[#allocation2 + $0x38] sm:$0xff] %vm427, %v426
      // Predicated region
      $region45: #{phv_forward.3} parent=39 // pred_check
        %p436 = pneg %p273
      $region46: #{phv_forward.3} parent=39 // pred_check_branch
        %438 = sbr.rel (%p436) target = $region48
      $region47: #{phv_forward.3} parent=39 // pred_region
        %v439 = vld [vmem:[#allocation2] sm:$0xff]
        %v440 = vld [vmem:[#allocation2 + $0x8] sm:$0xff]
        %v441 = vld [vmem:[#allocation2 + $0x10] sm:$0xff]
        %v442 = vld [vmem:[#allocation2 + $0x18] sm:$0xff]
        %v443 = vld [vmem:[#allocation2 + $0x20] sm:$0xff]
        %v444 = vld [vmem:[#allocation2 + $0x28] sm:$0xff]
        %v445 = vld [vmem:[#allocation2 + $0x30] sm:$0xff]
        %v446 = vld [vmem:[#allocation2 + $0x38] sm:$0xff]
        %v447 = vld [vmem:[%s2] sm:$0xff]
        %v448 = vld [vmem:[%s2 + $0x8] sm:$0xff]
        %v449 = vld [vmem:[%s2 + $0x10] sm:$0xff]
        %v450 = vld [vmem:[%s2 + $0x18] sm:$0xff]
        %v451 = vld [vmem:[%s3] sm:$0x1]
        %v453 = vperm.slane %v451, 0
        %v456 = vsel %vm427, %v439, 0
        %v459 = vsel %vm427, %v440, 0
        %v462 = vsel %vm427, %v441, 0
        %v465 = vsel %vm427, %v442, 0
        %v468 = vsel %vm427, %v443, 0
        %v471 = vsel %vm427, %v444, 0
        %v474 = vsel %vm427, %v445, 0
        %v477 = vsel %vm427, %v446, 0
        %479 = vmatpush.msra.mxu0 0.0
        %480 = vmatpush.msra.mxu0 0.0
        %481 = vmatpush.msra.mxu0 0.0
        %482 = vmatpush.msra.mxu0 0.0
        %483 = vmatpush.msra.mxu0 0.0
        %484 = vmatpush.msra.mxu0 0.0
        %485 = vmatpush.msra.mxu0 0.0
        %486 = vmatpush.msra.mxu0 0.0
        %487 = vmatpush.msra.mxu0 0.0
        %488 = vmatpush.msra.mxu0 0.0
        %489 = vmatpush.msra.mxu0 0.0
        %490 = vmatpush.msra.mxu0 0.0
        %491 = vmatpush.msra.mxu0 %v450
        %492 = vmatpush.msra.mxu0 %v449
        %493 = vmatpush.msra.mxu0 %v448
        %494 = vmatpush.msra.mxu0 %v447
        %495 = vmatmul.f32.gmra.mxu0 %v456
        %v496 = vpop.f32.mrf.mxu0
        %v497 = vadd.f32 %v453, %v496
        %498 = vmatmul.f32.gmra.mxu0 %v459
        %v499 = vpop.f32.mrf.mxu0
        %v500 = vadd.f32 %v453, %v499
        %501 = vmatmul.f32.gmra.mxu0 %v462
        %v502 = vpop.f32.mrf.mxu0
        %v503 = vadd.f32 %v453, %v502
        %504 = vmatmul.f32.gmra.mxu0 %v465
        %v505 = vpop.f32.mrf.mxu0
        %v506 = vadd.f32 %v453, %v505
        %507 = vmatmul.f32.gmra.mxu0 %v468
        %v508 = vpop.f32.mrf.mxu0
        %v509 = vadd.f32 %v453, %v508
        %510 = vmatmul.f32.gmra.mxu0 %v471
        %v511 = vpop.f32.mrf.mxu0
        %v512 = vadd.f32 %v453, %v511
        %513 = vmatmul.f32.gmra.mxu0 %v474
        %v514 = vpop.f32.mrf.mxu0
        %v515 = vadd.f32 %v453, %v514
        %516 = vmatmul.f32.gmra.mxu0 %v477
        %v517 = vpop.f32.mrf.mxu0
        %v518 = vadd.f32 %v453, %v517
        %519 = vdwg.mxu0
        %v520 = vmax.f32 %v497, 0.0
        %v521 = vmax.f32 %v500, 0.0
        %v522 = vmax.f32 %v503, 0.0
        %v523 = vmax.f32 %v506, 0.0
        %v524 = vmax.f32 %v509, 0.0
        %v525 = vmax.f32 %v512, 0.0
        %v526 = vmax.f32 %v515, 0.0
        %v527 = vmax.f32 %v518, 0.0
        %v528 = vld [vmem:[%s4] sm:$0xff]
        %v529 = vld [vmem:[%s4 + $0x8] sm:$0xff]
        %v530 = vld [vmem:[%s4 + $0x10] sm:$0xff]
        %v531 = vld [vmem:[%s4 + $0x18] sm:$0xff]
        %v532 = vld [vmem:[%s4 + $0x20] sm:$0xff]
        %v533 = vld [vmem:[%s4 + $0x28] sm:$0xff]
        %v534 = vld [vmem:[%s4 + $0x30] sm:$0xff]
        %v535 = vld [vmem:[%s4 + $0x38] sm:$0xff]
        %v536 = vld [vmem:[%s4 + $0x40] sm:$0xff]
        %v537 = vld [vmem:[%s4 + $0x48] sm:$0xff]
        %v538 = vld [vmem:[%s4 + $0x50] sm:$0xff]
        %v539 = vld [vmem:[%s4 + $0x58] sm:$0xff]
        %v540 = vld [vmem:[%s4 + $0x60] sm:$0xff]
        %v541 = vld [vmem:[%s4 + $0x68] sm:$0xff]
        %v542 = vld [vmem:[%s4 + $0x70] sm:$0xff]
        %v543 = vld [vmem:[%s4 + $0x78] sm:$0xff]
        %544 = vmatpush.msra.mxu0 %v543
        %545 = vmatpush.msra.mxu0 %v542
        %546 = vmatpush.msra.mxu0 %v541
        %547 = vmatpush.msra.mxu0 %v540
        %548 = vmatpush.msra.mxu0 %v539
        %549 = vmatpush.msra.mxu0 %v538
        %550 = vmatpush.msra.mxu0 %v537
        %551 = vmatpush.msra.mxu0 %v536
        %552 = vmatpush.msra.mxu0 %v535
        %553 = vmatpush.msra.mxu0 %v534
        %554 = vmatpush.msra.mxu0 %v533
        %555 = vmatpush.msra.mxu0 %v532
        %556 = vmatpush.msra.mxu0 %v531
        %557 = vmatpush.msra.mxu0 %v530
        %558 = vmatpush.msra.mxu0 %v529
        %559 = vmatpush.msra.mxu0 %v528
        %560 = vmatmul.f32.gmra.mxu0 %v520
        %v561 = vpop.f32.mrf.mxu0
        %v562 = vadd.f32 0.0, %v561
        %563 = vmatmul.f32.gmra.mxu0 %v521
        %v564 = vpop.f32.mrf.mxu0
        %v565 = vadd.f32 0.0, %v564
        %566 = vmatmul.f32.gmra.mxu0 %v522
        %v567 = vpop.f32.mrf.mxu0
        %v568 = vadd.f32 0.0, %v567
        %569 = vmatmul.f32.gmra.mxu0 %v523
        %v570 = vpop.f32.mrf.mxu0
        %v571 = vadd.f32 0.0, %v570
        %572 = vmatmul.f32.gmra.mxu0 %v524
        %v573 = vpop.f32.mrf.mxu0
        %v574 = vadd.f32 0.0, %v573
        %575 = vmatmul.f32.gmra.mxu0 %v525
        %v576 = vpop.f32.mrf.mxu0
        %v577 = vadd.f32 0.0, %v576
        %578 = vmatmul.f32.gmra.mxu0 %v526
        %v579 = vpop.f32.mrf.mxu0
        %v580 = vadd.f32 0.0, %v579
        %581 = vmatmul.f32.gmra.mxu0 %v527
        %v582 = vpop.f32.mrf.mxu0
        %v583 = vadd.f32 0.0, %v582
        %584 = vdwg.mxu0
        %v585 = vpack.c.bf16 %v562, %v562
        %v586 = vpack.c.bf16 %v565, %v565
        %v587 = vpack.c.bf16 %v568, %v568
        %v588 = vpack.c.bf16 %v571, %v571
        %v589 = vpack.c.bf16 %v574, %v574
        %v590 = vpack.c.bf16 %v577, %v577
        %v591 = vpack.c.bf16 %v580, %v580
        %v592 = vpack.c.bf16 %v583, %v583
        %vm593 = vcmask 257024
        %594 = vst.msk [vmem:[%s271] sm:$0xf] %vm593, %v585
        %595 = vst.msk [vmem:[%s271 + $0x4] sm:$0xf] %vm593, %v586
        %596 = vst.msk [vmem:[%s271 + $0x8] sm:$0xf] %vm593, %v587
        %597 = vst.msk [vmem:[%s271 + $0xc] sm:$0xf] %vm593, %v588
        %598 = vst.msk [vmem:[%s271 + $0x10] sm:$0xf] %vm593, %v589
        %599 = vst.msk [vmem:[%s271 + $0x14] sm:$0xf] %vm593, %v590
        %600 = vst.msk [vmem:[%s271 + $0x18] sm:$0xf] %vm593, %v591
        %601 = vst.msk [vmem:[%s271 + $0x1c] sm:$0xf] %vm593, %v592
      $region48: #{phv_forward.3} parent=39 // pred_fallthru
        _
      %s602 = smul.u32 8, %s20
      %p603 = scmp.lt.s32.totalorder %s602, 15
      %s604 = scalar_select %p603, %s602, 15
      %s605 = smul.addr %s604, 4
      %s606 = scalar_lea.vmem %s5, %s605
      // Predicated region
      $region49: #{phv_forward.3} parent=39 // pred_check
        %p607 = pneg %p163
      $region50: #{phv_forward.3} parent=39 // pred_check_branch
        %609 = sbr.rel (%p607) target = $region52
      $region51: #{phv_forward.3} parent=39 // pred_region
        %s610 = smul.u32 8, %s20
      $region52: #{phv_forward.3} parent=39 // pred_fallthru
        _
    $region40: #{phv_forward.3} parent=5 // pred_fallthru
      _
    %p611 = scmp.le.s32.totalorder 2, %s11
    // Predicated region
    $region53: #{phv_forward.3} parent=5 // pred_check
      %p612 = pneg %p611
    $region54: #{phv_forward.3} parent=5 // pred_check_branch
      %614 = sbr.rel (%p612) target = $region56
    $region55: #{phv_forward.3} parent=5 // pred_region
      %s615 = ssub.s32 %s11, 2
      // Predicated region
      $region57: #{phv_forward.3} parent=55 // pred_check
        %p616 = pneg %p169
      $region58: #{phv_forward.3} parent=55 // pred_check_branch
        %618 = sbr.rel (%p616) target = $region60
      $region59: #{phv_forward.3} parent=55 // pred_region
        %s619 = smul.u32 8, %s22
        %p620 = scmp.lt.s32.totalorder %s619, 15
        %s621 = scalar_select %p620, %s619, 15
        %s622 = smul.addr %s621, 4
        %s623 = scalar_lea.vmem %s5, %s622
      $region60: #{phv_forward.3} parent=55 // pred_fallthru
        _
    $region56: #{phv_forward.3} parent=5 // pred_fallthru
      _
  $region6: #{phv_forward.3} parent=0 // loop_footer
    %s15 = sadd.s32 1, %s11
  $region7: #{phv_forward.3} parent=0 // loop_footer_branch
    %10 = sbr.rel target = $region3
  $region8: #{phv_forward.3} parent=0 // loop_exit
    _

</llo_original>
